<compile_context>
chip_gen: v7x
topology: tpu7x:2x2x1
jax: 0.10.0
libtpu: 0.0.40
codegen_flags: <defaults>
</compile_context>

<pallas_src>
import math
import functools

import jax
import jax.numpy as jnp
from jax import lax
from jax.experimental import pallas as pl
from jax.experimental.pallas import tpu as pltpu


def _perceiver_attn_kernel(q_ref, kv_ref, wq_ref, wk_ref, wv_ref, wo_ref, out_ref,
                           qp_ref, kp_ref, vp_ref, ctx_ref,
                           *, n_heads: int, dim_head: int, batch_block: int,
                           q_len: int, kv_len: int, mxu_dtype):
    # q_ref  : (Bblk*Lq, Din)   kv_ref : (Bblk*Lk, Din)
    # wq_ref : (Din, inner)     wk_ref/wv_ref : (Din, inner)   wo_ref : (inner, Din)
    # out_ref: (Bblk*Lq, Din)
    # scratch: qp (Bblk*Lq, inner), kp/vp (Bblk*Lk, inner), ctx (Bblk*Lq, inner)
    inner = n_heads * dim_head
    inv_scale = 1.0 / math.sqrt(dim_head)
    stage_dtype = ctx_ref.dtype

    def mxu(x):
        return x if mxu_dtype is None else x.astype(mxu_dtype)

    # ---- Projections: one big MXU matmul each for the whole batch block. ----------
    qp = jnp.dot(mxu(q_ref[...]), mxu(wq_ref[...]),
                 preferred_element_type=jnp.float32)              # (Bblk*Lq, inner)
    kvb = mxu(kv_ref[...])
    kp = jnp.dot(kvb, mxu(wk_ref[...]), preferred_element_type=jnp.float32)
    vp = jnp.dot(kvb, mxu(wv_ref[...]), preferred_element_type=jnp.float32)

    # Stage projections in VMEM so the per-batch loop only keeps small slices live
    # in vregs (bounds live ranges; avoids spill pressure at large batch blocks).
    qp_ref[...] = (qp * inv_scale).astype(stage_dtype)            # fold 1/sqrt(Dh) once
    kp_ref[...] = kp.astype(stage_dtype)
    vp_ref[...] = vp.astype(stage_dtype)

    sub_q = math.gcd(q_len, 8)
    sub_k = math.gcd(kv_len, 8)

    def attend_one_batch(b):
        if isinstance(b, int):                       # static index (batch_block == 1)
            q0, k0 = b * q_len, b * kv_len
        else:                                        # traced index inside pl.loop
            q0 = pl.multiple_of(b * q_len, sub_q)
            k0 = pl.multiple_of(b * kv_len, sub_k)
        qb = qp_ref[pl.ds(q0, q_len), :]             # (Lq, inner)
        kb = kp_ref[pl.ds(k0, kv_len), :]            # (Lk, inner)
        vb = vp_ref[pl.ds(k0, kv_len), :]            # (Lk, inner)

        ctx_parts = []
        for h in range(n_heads):                     # small fixed head loop (unrolled)
            cols = slice(h * dim_head, (h + 1) * dim_head)
            qh, kh, vh = qb[:, cols], kb[:, cols], vb[:, cols]
            # q @ k^T contracting last dims (no materialized transpose).
            scores = lax.dot_general(qh, kh,
                                     dimension_numbers=(((1,), (1,)), ((), ())),
                                     preferred_element_type=jnp.float32)   # (Lq, Lk)
            # Numerically stable softmax over keys; divide -> EUP reciprocal.
            m = jnp.max(scores, axis=-1, keepdims=True)
            e = jnp.exp(scores - m)
            s = jnp.sum(e, axis=-1, keepdims=True)
            w = e * pl.reciprocal(s, approx=True)
            ctx_parts.append(jnp.dot(mxu(w), vh, preferred_element_type=jnp.float32))

        # One (Lq, inner)-wide store per batch instead of H narrow per-head stores.
        ctx_b = jnp.concatenate(ctx_parts, axis=-1)               # (Lq, inner)
        ctx_ref[pl.ds(q0, q_len), :] = ctx_b.astype(stage_dtype)

    if batch_block == 1:
        attend_one_batch(0)
    else:
        @pl.loop(0, batch_block)
        def _(b):
            attend_one_batch(b)

    # ---- Output projection over the lane-dense context slab (one MXU matmul). -----
    out = jnp.dot(ctx_ref[...], mxu(wo_ref[...]),
                  preferred_element_type=jnp.float32)             # (Bblk*Lq, Din)
    out_ref[...] = out.astype(out_ref.dtype)


def _per_step_vmem_bytes(bblk, q_len, kv_len, in_dim, inner, stage_bytes):
    """Rough per-grid-step VMEM estimate (activations f32, weights single-buffered)."""
    rows_q, rows_k = bblk * q_len, bblk * kv_len
    io = 2 * (rows_q * in_dim + rows_k * in_dim + rows_q * in_dim) * 4   # q, kv, out x2
    weights = (3 * in_dim * inner + inner * in_dim) * 4                   # wq, wk, wv, wo
    scratch = (2 * rows_q * inner + 2 * rows_k * inner) * stage_bytes     # qp, ctx, kp, vp
    return io + weights + scratch


def _pick_batch_block(B, q_len, kv_len, in_dim, inner, stage_bytes, *,
                      target_q_rows=256, vmem_budget=40 << 20):
    """Largest divisor of B that keeps >= 2 grid steps (pipelining / v7x megacore),
    honors the (8,128) sublane constraint on partial blocks, fits the VMEM budget,
    and stops growing once >= target_q_rows query rows per step are reached."""
    best = None
    for d in range(1, B + 1):
        if B % d:
            continue
        rows_q, rows_k = d * q_len, d * kv_len
        if d < B and (rows_q % 8 or rows_k % 8):
            continue                                   # partial blocks need %8 sublanes
        if B >= 2 and B // d < 2:
            continue                                   # keep at least 2 grid steps
        if _per_step_vmem_bytes(d, q_len, kv_len, in_dim, inner, stage_bytes) > vmem_budget:
            continue
        if best is not None and best * q_len >= target_q_rows:
            break
        best = d
    if best is None:
        best = B                                       # correctness fallback: grid=(1,)
    return best


def perceiver_attention(q, kv, wq, wkv, wo, *, n_heads: int, dim_head: int,
                        mxu_dtype=None):
    B, Lq, Din = q.shape
    _, Lk, _ = kv.shape
    inner = n_heads * dim_head
    assert wq.shape == (Din, inner)
    assert wkv.shape == (Din, 2 * inner)
    assert wo.shape == (inner, Din)

    # Split the fused kv_proj weight into lane-aligned, head-contiguous K / V weights.
    # Cheap reshape+slice (XLA fuses it); removes the gather AND the in-kernel
    # mid-vreg lane split of a (.., 2*inner) result.
    wkv4 = wkv.reshape(Din, n_heads, 2, dim_head)
    wk = wkv4[:, :, 0, :].reshape(Din, inner)
    wv = wkv4[:, :, 1, :].reshape(Din, inner)

    stage_dtype = jnp.float32 if mxu_dtype is None else jnp.dtype(mxu_dtype)
    stage_bytes = jnp.dtype(stage_dtype).itemsize

    bblk = _pick_batch_block(B, Lq, Lk, Din, inner, stage_bytes)
    rows_q, rows_k = bblk * Lq, bblk * Lk
    grid = (B // bblk,)

    # Flatten batch into rows in the wrapper (free row-major reshape) so the kernel
    # never reshapes and the projections see large-M MXU tiles.
    q2 = q.reshape(B * Lq, Din)
    kv2 = kv.reshape(B * Lk, Din)

    kernel = functools.partial(
        _perceiver_attn_kernel,
        n_heads=n_heads, dim_head=dim_head, batch_block=bblk,
        q_len=Lq, kv_len=Lk, mxu_dtype=mxu_dtype)

    # Constant-index weight blocks: single buffer (no dead 2x VMEM copy).
    def weight_spec(shape):
        return pl.BlockSpec(shape, lambda i: (0, 0), pipeline_mode=pl.Buffered(1))

    vmem_est = _per_step_vmem_bytes(bblk, Lq, Lk, Din, inner, stage_bytes)
    compiler_kwargs = dict(dimension_semantics=("parallel",))
    if vmem_est > (16 << 20):   # above the smallest (v5e) default scoped limit
        compiler_kwargs["vmem_limit_bytes"] = min(int(vmem_est * 1.5), 48 << 20)

    out2 = pl.pallas_call(
        kernel,
        out_shape=jax.ShapeDtypeStruct((B * Lq, Din), q.dtype),
        grid_spec=pltpu.PrefetchScalarGridSpec(
            num_scalar_prefetch=0,
            grid=grid,
            in_specs=[
                pl.BlockSpec((rows_q, Din), lambda i: (i, 0)),   # q rows
                pl.BlockSpec((rows_k, Din), lambda i: (i, 0)),   # kv rows
                weight_spec((Din, inner)),                       # wq
                weight_spec((Din, inner)),                       # wk
                weight_spec((Din, inner)),                       # wv
                weight_spec((inner, Din)),                       # wo
            ],
            out_specs=pl.BlockSpec((rows_q, Din), lambda i: (i, 0)),
            scratch_shapes=[
                pltpu.VMEM((rows_q, inner), stage_dtype),        # qp (scaled)
                pltpu.VMEM((rows_k, inner), stage_dtype),        # kp
                pltpu.VMEM((rows_k, inner), stage_dtype),        # vp
                pltpu.VMEM((rows_q, inner), stage_dtype),        # ctx
            ],
        ),
        compiler_params=pltpu.CompilerParams(**compiler_kwargs),
    )(q2, kv2, wq, wk, wv, wo)

    return out2.reshape(B, Lq, Din)


def perceiver_attention_ref(q, kv, wq, wkv, wo, *, n_heads: int, dim_head: int):
    """Plain-JAX reference mirroring the PyTorch forward exactly."""
    B, Lq, Din = q.shape
    Lk = kv.shape[1]
    inner = n_heads * dim_head
    scale = math.sqrt(dim_head)

    qp = q @ wq                                                            # (B, Lq, inner)
    kvp = kv @ wkv                                                         # (B, Lk, 2*inner)
    qh = qp.reshape(B, Lq, n_heads, dim_head).transpose(0, 2, 1, 3)        # (B,H,Lq,Dh)
    kvh = kvp.reshape(B, Lk, n_heads, 2 * dim_head).transpose(0, 2, 1, 3)  # (B,H,Lk,2Dh)
    k, v = kvh[..., :dim_head], kvh[..., dim_head:]
    scores = jnp.einsum("bhqd,bhkd->bhqk", qh, k) / scale
    weights = jax.nn.softmax(scores, axis=-1)
    ctx = jnp.einsum("bhqk,bhkd->bhqd", weights, v)
    ctx = ctx.transpose(0, 2, 1, 3).reshape(B, Lq, inner)
    return ctx @ wo


if __name__ == "__main__":
    # Module hyperparameters (small, consistent with the forward).
    in_dim = 32
    dim_head = 16
    n_heads = 4
    inner_dim = dim_head * n_heads

    batch = 2
    query_length = 8
    cross_size = 16

    key = jax.random.PRNGKey(0)
    k0, k1, k2, k3, k4 = jax.random.split(key, 5)

    # Deterministic parameter init (uniform, nn.Linear-like scale), stored as (in, out).
    def linear_w(k, fan_in, fan_out):
        bound = 1.0 / math.sqrt(fan_in)
        return jax.random.uniform(k, (fan_in, fan_out), jnp.float32, -bound, bound)

    wq = linear_w(k0, in_dim, inner_dim)
    wkv = linear_w(k1, in_dim, 2 * inner_dim)
    wo = linear_w(k2, inner_dim, in_dim)

    q = jax.random.normal(k3, (batch, query_length, in_dim), jnp.float32)
    kv = jax.random.normal(k4, (batch, cross_size, in_dim), jnp.float32)

    # f32 MXU path for a tight numerical check; pass mxu_dtype=jnp.bfloat16 for peak
    # MXU throughput on v5e/v6e/v7x (softmax math stays f32 either way).
    out = perceiver_attention(q, kv, wq, wkv, wo,
                              n_heads=n_heads, dim_head=dim_head)
    out = jax.block_until_ready(out)

    ref = perceiver_attention_ref(q, kv, wq, wkv, wo,
                                  n_heads=n_heads, dim_head=dim_head)
    assert out.shape == (batch, query_length, in_dim)
    # Tolerance slightly relaxed for the EUP approximate reciprocal in the softmax.
    assert jnp.allclose(out, ref, atol=2e-3, rtol=2e-3), "mismatch vs reference"

    print("KERNEL_OK")
</pallas_src>

<mosaic_0001>
module attributes {stable_mosaic.version = 11 : i64} {
  func.func @_perceiver_attn_kernel(%arg0: i32, %arg1: memref<8x32xf32, #tpu.memory_space<vmem>>, %arg2: memref<16x32xf32, #tpu.memory_space<vmem>>, %arg3: memref<32x64xf32, #tpu.memory_space<vmem>>, %arg4: memref<32x64xf32, #tpu.memory_space<vmem>>, %arg5: memref<32x64xf32, #tpu.memory_space<vmem>>, %arg6: memref<64x32xf32, #tpu.memory_space<vmem>>, %arg7: memref<8x32xf32, #tpu.memory_space<vmem>>, %arg8: memref<8x64xf32, #tpu.memory_space<vmem>>, %arg9: memref<16x64xf32, #tpu.memory_space<vmem>>, %arg10: memref<16x64xf32, #tpu.memory_space<vmem>>, %arg11: memref<8x64xf32, #tpu.memory_space<vmem>>) attributes {dimension_semantics = [#tpu.dimension_semantics<parallel>], iteration_bounds = array<i64: 2>, scalar_prefetch = 0 : i64, scratch_operands = 4 : i64, tpu.core_type = #tpu.core_type<tc>, window_params = [{transform_indices = @transform_0, window_bounds = array<i64: 8, 32>}, {transform_indices = @transform_1, window_bounds = array<i64: 16, 32>}, {pipeline_mode = #tpu.pipeline_mode<synchronous>, transform_indices = @transform_2, window_bounds = array<i64: 32, 64>}, {pipeline_mode = #tpu.pipeline_mode<synchronous>, transform_indices = @transform_3, window_bounds = array<i64: 32, 64>}, {pipeline_mode = #tpu.pipeline_mode<synchronous>, transform_indices = @transform_4, window_bounds = array<i64: 32, 64>}, {pipeline_mode = #tpu.pipeline_mode<synchronous>, transform_indices = @transform_5, window_bounds = array<i64: 64, 32>}, {transform_indices = @transform_6, window_bounds = array<i64: 8, 32>}]} {
    %c0 = arith.constant 0 : index
    %c0_0 = arith.constant 0 : index
    %0 = vector.load %arg1[%c0, %c0_0] : memref<8x32xf32, #tpu.memory_space<vmem>>, vector<8x32xf32>
    %c0_1 = arith.constant 0 : index
    %c0_2 = arith.constant 0 : index
    %1 = vector.load %arg3[%c0_1, %c0_2] : memref<32x64xf32, #tpu.memory_space<vmem>>, vector<32x64xf32>
    %cst = arith.constant dense<0.000000e+00> : vector<8x64xf32>
    %2 = tpu.matmul %0, %1, %cst {dimension_numbers = #tpu.dot_dimension_numbers<[1], [0], [0], [1], [0, 0, 1, 1], [], []>} : vector<8x32xf32>, vector<32x64xf32>, vector<8x64xf32> -> vector<8x64xf32>
    %c0_3 = arith.constant 0 : index
    %c0_4 = arith.constant 0 : index
    %3 = vector.load %arg2[%c0_3, %c0_4] : memref<16x32xf32, #tpu.memory_space<vmem>>, vector<16x32xf32>
    %c0_5 = arith.constant 0 : index
    %c0_6 = arith.constant 0 : index
    %4 = vector.load %arg4[%c0_5, %c0_6] : memref<32x64xf32, #tpu.memory_space<vmem>>, vector<32x64xf32>
    %cst_7 = arith.constant dense<0.000000e+00> : vector<16x64xf32>
    %5 = tpu.matmul %3, %4, %cst_7 {dimension_numbers = #tpu.dot_dimension_numbers<[1], [0], [0], [1], [0, 0, 1, 1], [], []>} : vector<16x32xf32>, vector<32x64xf32>, vector<16x64xf32> -> vector<16x64xf32>
    %c0_8 = arith.constant 0 : index
    %c0_9 = arith.constant 0 : index
    %6 = vector.load %arg5[%c0_8, %c0_9] : memref<32x64xf32, #tpu.memory_space<vmem>>, vector<32x64xf32>
    %cst_10 = arith.constant dense<0.000000e+00> : vector<16x64xf32>
    %7 = tpu.matmul %3, %6, %cst_10 {dimension_numbers = #tpu.dot_dimension_numbers<[1], [0], [0], [1], [0, 0, 1, 1], [], []>} : vector<16x32xf32>, vector<32x64xf32>, vector<16x64xf32> -> vector<16x64xf32>
    %cst_11 = arith.constant 2.500000e-01 : f32
    %8 = vector.broadcast %cst_11 : f32 to vector<8x64xf32>
    %9 = arith.mulf %2, %8 : vector<8x64xf32>
    %c0_12 = arith.constant 0 : index
    %c0_13 = arith.constant 0 : index
    %10 = vector.load %arg8[%c0_12, %c0_13] : memref<8x64xf32, #tpu.memory_space<vmem>>, vector<8x64xf32>
    tpu.vector_store %arg8[%c0_12, %c0_13], %9 {strides = array<i32>} : memref<8x64xf32, #tpu.memory_space<vmem>>, vector<8x64xf32>,
    %c0_14 = arith.constant 0 : index
    %c0_15 = arith.constant 0 : index
    %11 = vector.load %arg9[%c0_14, %c0_15] : memref<16x64xf32, #tpu.memory_space<vmem>>, vector<16x64xf32>
    tpu.vector_store %arg9[%c0_14, %c0_15], %5 {strides = array<i32>} : memref<16x64xf32, #tpu.memory_space<vmem>>, vector<16x64xf32>,
    %c0_16 = arith.constant 0 : index
    %c0_17 = arith.constant 0 : index
    %12 = vector.load %arg10[%c0_16, %c0_17] : memref<16x64xf32, #tpu.memory_space<vmem>>, vector<16x64xf32>
    tpu.vector_store %arg10[%c0_16, %c0_17], %7 {strides = array<i32>} : memref<16x64xf32, #tpu.memory_space<vmem>>, vector<16x64xf32>,
    %c0_18 = arith.constant 0 : index
    %c0_19 = arith.constant 0 : index
    %13 = vector.load %arg8[%c0_18, %c0_19] : memref<8x64xf32, #tpu.memory_space<vmem>>, vector<8x64xf32>
    %c0_20 = arith.constant 0 : index
    %c0_21 = arith.constant 0 : index
    %14 = vector.load %arg9[%c0_20, %c0_21] : memref<16x64xf32, #tpu.memory_space<vmem>>, vector<16x64xf32>
    %c0_22 = arith.constant 0 : index
    %c0_23 = arith.constant 0 : index
    %15 = vector.load %arg10[%c0_22, %c0_23] : memref<16x64xf32, #tpu.memory_space<vmem>>, vector<16x64xf32>
    %16 = vector.extract_strided_slice %13 {offsets = [0, 0], sizes = [8, 16], strides = [1, 1]} : vector<8x64xf32> to vector<8x16xf32>
    %17 = vector.extract_strided_slice %14 {offsets = [0, 0], sizes = [16, 16], strides = [1, 1]} : vector<16x64xf32> to vector<16x16xf32>
    %18 = vector.extract_strided_slice %15 {offsets = [0, 0], sizes = [16, 16], strides = [1, 1]} : vector<16x64xf32> to vector<16x16xf32>
    %cst_24 = arith.constant dense<0.000000e+00> : vector<8x16xf32>
    %19 = tpu.matmul %16, %17, %cst_24 {dimension_numbers = #tpu.dot_dimension_numbers<[1], [1], [0], [0], [0, 0, 1, 0], [], []>} : vector<8x16xf32>, vector<16x16xf32>, vector<8x16xf32> -> vector<8x16xf32>
    %cst_25 = arith.constant dense<0xFF800000> : vector<8xf32>
    %20 = vector.multi_reduction <maximumf>, %19, %cst_25 [1] : vector<8x16xf32> to vector<8xf32>
    %21 = vector.shape_cast %20 : vector<8xf32> to vector<8x1xf32>
    %22 = vector.broadcast %21 : vector<8x1xf32> to vector<8x16xf32>
    %23 = arith.subf %19, %22 : vector<8x16xf32>
    %24 = math.exp %23 : vector<8x16xf32>
    %cst_26 = arith.constant dense<0.000000e+00> : vector<8xf32>
    %25 = vector.multi_reduction <add>, %24, %cst_26 [1] : vector<8x16xf32> to vector<8xf32>
    %26 = vector.shape_cast %25 : vector<8xf32> to vector<8x1xf32>
    %27 = tpu.reciprocal %26 {approx = true} : vector<8x1xf32> -> vector<8x1xf32>
    %28 = vector.broadcast %27 : vector<8x1xf32> to vector<8x16xf32>
    %29 = arith.mulf %24, %28 : vector<8x16xf32>
    %cst_27 = arith.constant dense<0.000000e+00> : vector<8x16xf32>
    %30 = tpu.matmul %29, %18, %cst_27 {dimension_numbers = #tpu.dot_dimension_numbers<[1], [0], [0], [1], [0, 0, 1, 1], [], []>} : vector<8x16xf32>, vector<16x16xf32>, vector<8x16xf32> -> vector<8x16xf32>
    %31 = vector.extract_strided_slice %13 {offsets = [0, 16], sizes = [8, 16], strides = [1, 1]} : vector<8x64xf32> to vector<8x16xf32>
    %32 = vector.extract_strided_slice %14 {offsets = [0, 16], sizes = [16, 16], strides = [1, 1]} : vector<16x64xf32> to vector<16x16xf32>
    %33 = vector.extract_strided_slice %15 {offsets = [0, 16], sizes = [16, 16], strides = [1, 1]} : vector<16x64xf32> to vector<16x16xf32>
    %cst_28 = arith.constant dense<0.000000e+00> : vector<8x16xf32>
    %34 = tpu.matmul %31, %32, %cst_28 {dimension_numbers = #tpu.dot_dimension_numbers<[1], [1], [0], [0], [0, 0, 1, 0], [], []>} : vector<8x16xf32>, vector<16x16xf32>, vector<8x16xf32> -> vector<8x16xf32>
    %cst_29 = arith.constant dense<0xFF800000> : vector<8xf32>
    %35 = vector.multi_reduction <maximumf>, %34, %cst_29 [1] : vector<8x16xf32> to vector<8xf32>
    %36 = vector.shape_cast %35 : vector<8xf32> to vector<8x1xf32>
    %37 = vector.broadcast %36 : vector<8x1xf32> to vector<8x16xf32>
    %38 = arith.subf %34, %37 : vector<8x16xf32>
    %39 = math.exp %38 : vector<8x16xf32>
    %cst_30 = arith.constant dense<0.000000e+00> : vector<8xf32>
    %40 = vector.multi_reduction <add>, %39, %cst_30 [1] : vector<8x16xf32> to vector<8xf32>
    %41 = vector.shape_cast %40 : vector<8xf32> to vector<8x1xf32>
    %42 = tpu.reciprocal %41 {approx = true} : vector<8x1xf32> -> vector<8x1xf32>
    %43 = vector.broadcast %42 : vector<8x1xf32> to vector<8x16xf32>
    %44 = arith.mulf %39, %43 : vector<8x16xf32>
    %cst_31 = arith.constant dense<0.000000e+00> : vector<8x16xf32>
    %45 = tpu.matmul %44, %33, %cst_31 {dimension_numbers = #tpu.dot_dimension_numbers<[1], [0], [0], [1], [0, 0, 1, 1], [], []>} : vector<8x16xf32>, vector<16x16xf32>, vector<8x16xf32> -> vector<8x16xf32>
    %46 = vector.extract_strided_slice %13 {offsets = [0, 32], sizes = [8, 16], strides = [1, 1]} : vector<8x64xf32> to vector<8x16xf32>
    %47 = vector.extract_strided_slice %14 {offsets = [0, 32], sizes = [16, 16], strides = [1, 1]} : vector<16x64xf32> to vector<16x16xf32>
    %48 = vector.extract_strided_slice %15 {offsets = [0, 32], sizes = [16, 16], strides = [1, 1]} : vector<16x64xf32> to vector<16x16xf32>
    %cst_32 = arith.constant dense<0.000000e+00> : vector<8x16xf32>
    %49 = tpu.matmul %46, %47, %cst_32 {dimension_numbers = #tpu.dot_dimension_numbers<[1], [1], [0], [0], [0, 0, 1, 0], [], []>} : vector<8x16xf32>, vector<16x16xf32>, vector<8x16xf32> -> vector<8x16xf32>
    %cst_33 = arith.constant dense<0xFF800000> : vector<8xf32>
    %50 = vector.multi_reduction <maximumf>, %49, %cst_33 [1] : vector<8x16xf32> to vector<8xf32>
    %51 = vector.shape_cast %50 : vector<8xf32> to vector<8x1xf32>
    %52 = vector.broadcast %51 : vector<8x1xf32> to vector<8x16xf32>
    %53 = arith.subf %49, %52 : vector<8x16xf32>
    %54 = math.exp %53 : vector<8x16xf32>
    %cst_34 = arith.constant dense<0.000000e+00> : vector<8xf32>
    %55 = vector.multi_reduction <add>, %54, %cst_34 [1] : vector<8x16xf32> to vector<8xf32>
    %56 = vector.shape_cast %55 : vector<8xf32> to vector<8x1xf32>
    %57 = tpu.reciprocal %56 {approx = true} : vector<8x1xf32> -> vector<8x1xf32>
    %58 = vector.broadcast %57 : vector<8x1xf32> to vector<8x16xf32>
    %59 = arith.mulf %54, %58 : vector<8x16xf32>
    %cst_35 = arith.constant dense<0.000000e+00> : vector<8x16xf32>
    %60 = tpu.matmul %59, %48, %cst_35 {dimension_numbers = #tpu.dot_dimension_numbers<[1], [0], [0], [1], [0, 0, 1, 1], [], []>} : vector<8x16xf32>, vector<16x16xf32>, vector<8x16xf32> -> vector<8x16xf32>
    %61 = vector.extract_strided_slice %13 {offsets = [0, 48], sizes = [8, 16], strides = [1, 1]} : vector<8x64xf32> to vector<8x16xf32>
    %62 = vector.extract_strided_slice %14 {offsets = [0, 48], sizes = [16, 16], strides = [1, 1]} : vector<16x64xf32> to vector<16x16xf32>
    %63 = vector.extract_strided_slice %15 {offsets = [0, 48], sizes = [16, 16], strides = [1, 1]} : vector<16x64xf32> to vector<16x16xf32>
    %cst_36 = arith.constant dense<0.000000e+00> : vector<8x16xf32>
    %64 = tpu.matmul %61, %62, %cst_36 {dimension_numbers = #tpu.dot_dimension_numbers<[1], [1], [0], [0], [0, 0, 1, 0], [], []>} : vector<8x16xf32>, vector<16x16xf32>, vector<8x16xf32> -> vector<8x16xf32>
    %cst_37 = arith.constant dense<0xFF800000> : vector<8xf32>
    %65 = vector.multi_reduction <maximumf>, %64, %cst_37 [1] : vector<8x16xf32> to vector<8xf32>
    %66 = vector.shape_cast %65 : vector<8xf32> to vector<8x1xf32>
    %67 = vector.broadcast %66 : vector<8x1xf32> to vector<8x16xf32>
    %68 = arith.subf %64, %67 : vector<8x16xf32>
    %69 = math.exp %68 : vector<8x16xf32>
    %cst_38 = arith.constant dense<0.000000e+00> : vector<8xf32>
    %70 = vector.multi_reduction <add>, %69, %cst_38 [1] : vector<8x16xf32> to vector<8xf32>
    %71 = vector.shape_cast %70 : vector<8xf32> to vector<8x1xf32>
    %72 = tpu.reciprocal %71 {approx = true} : vector<8x1xf32> -> vector<8x1xf32>
    %73 = vector.broadcast %72 : vector<8x1xf32> to vector<8x16xf32>
    %74 = arith.mulf %69, %73 : vector<8x16xf32>
    %cst_39 = arith.constant dense<0.000000e+00> : vector<8x16xf32>
    %75 = tpu.matmul %74, %63, %cst_39 {dimension_numbers = #tpu.dot_dimension_numbers<[1], [0], [0], [1], [0, 0, 1, 1], [], []>} : vector<8x16xf32>, vector<16x16xf32>, vector<8x16xf32> -> vector<8x16xf32>
    %76 = tpu.concatenate %30, %45, %60, %75 in 1 : vector<8x16xf32>, vector<8x16xf32>, vector<8x16xf32>, vector<8x16xf32> -> vector<8x64xf32>
    %c0_40 = arith.constant 0 : index
    %c0_41 = arith.constant 0 : index
    %77 = vector.load %arg11[%c0_40, %c0_41] : memref<8x64xf32, #tpu.memory_space<vmem>>, vector<8x64xf32>
    tpu.vector_store %arg11[%c0_40, %c0_41], %76 {strides = array<i32>} : memref<8x64xf32, #tpu.memory_space<vmem>>, vector<8x64xf32>,
    %c0_42 = arith.constant 0 : index
    %c0_43 = arith.constant 0 : index
    %78 = vector.load %arg11[%c0_42, %c0_43] : memref<8x64xf32, #tpu.memory_space<vmem>>, vector<8x64xf32>
    %c0_44 = arith.constant 0 : index
    %c0_45 = arith.constant 0 : index
    %79 = vector.load %arg6[%c0_44, %c0_45] : memref<64x32xf32, #tpu.memory_space<vmem>>, vector<64x32xf32>
    %cst_46 = arith.constant dense<0.000000e+00> : vector<8x32xf32>
    %80 = tpu.matmul %78, %79, %cst_46 {dimension_numbers = #tpu.dot_dimension_numbers<[1], [0], [0], [1], [0, 0, 1, 1], [], []>} : vector<8x64xf32>, vector<64x32xf32>, vector<8x32xf32> -> vector<8x32xf32>
    %c0_47 = arith.constant 0 : index
    %c0_48 = arith.constant 0 : index
    %81 = vector.load %arg7[%c0_47, %c0_48] : memref<8x32xf32, #tpu.memory_space<vmem>>, vector<8x32xf32>
    tpu.vector_store %arg7[%c0_47, %c0_48], %80 {strides = array<i32>} : memref<8x32xf32, #tpu.memory_space<vmem>>, vector<8x32xf32>,
    return
  }
  func.func @transform_0(%arg0: i32) -> (i32, i32) {
    %c0_i32 = arith.constant 0 : i32
    %c0_i32_0 = arith.constant 0 : i32
    return %arg0, %c0_i32 : i32, i32
  }
  func.func @transform_1(%arg0: i32) -> (i32, i32) {
    %c0_i32 = arith.constant 0 : i32
    %c0_i32_0 = arith.constant 0 : i32
    return %arg0, %c0_i32 : i32, i32
  }
  func.func @transform_2(%arg0: i32) -> (i32, i32) {
    %c0_i32 = arith.constant 0 : i32
    %c0_i32_0 = arith.constant 0 : i32
    %c0_i32_1 = arith.constant 0 : i32
    return %c0_i32, %c0_i32_0 : i32, i32
  }
  func.func @transform_3(%arg0: i32) -> (i32, i32) {
    %c0_i32 = arith.constant 0 : i32
    %c0_i32_0 = arith.constant 0 : i32
    %c0_i32_1 = arith.constant 0 : i32
    return %c0_i32, %c0_i32_0 : i32, i32
  }
  func.func @transform_4(%arg0: i32) -> (i32, i32) {
    %c0_i32 = arith.constant 0 : i32
    %c0_i32_0 = arith.constant 0 : i32
    %c0_i32_1 = arith.constant 0 : i32
    return %c0_i32, %c0_i32_0 : i32, i32
  }
  func.func @transform_5(%arg0: i32) -> (i32, i32) {
    %c0_i32 = arith.constant 0 : i32
    %c0_i32_0 = arith.constant 0 : i32
    %c0_i32_1 = arith.constant 0 : i32
    return %c0_i32, %c0_i32_0 : i32, i32
  }
  func.func @transform_6(%arg0: i32) -> (i32, i32) {
    %c0_i32 = arith.constant 0 : i32
    %c0_i32_0 = arith.constant 0 : i32
    return %arg0, %c0_i32 : i32, i32
  }
}

</mosaic_0001>

<llo_original>
// kernel: tpu_custom_call.1
$region0: #{tpu_custom_call.1}
  #allocation0 [shape = 'u32[]', space=smem, size = 0x4, offset = 0x4, fixed_abs, tag = 'smem constant byte address 0x4 - core index']
  #allocation1 [shape = 'u32[144,128]{1,0:T(1,128)}', space=vmem, size = 0x12000, scoped, tag = 'internal scratch']
  #allocation2 [shape = 'f32[8,64]{1,0:T(8,128)}', space=vmem, size = 0x1000, scoped, tag = 'scratch operand']
  #allocation3 [shape = 'f32[16,64]{1,0:T(8,128)}', space=vmem, size = 0x2000, scoped, tag = 'scratch operand']
  #allocation4 [shape = 'f32[16,64]{1,0:T(8,128)}', space=vmem, size = 0x2000, scoped, tag = 'scratch operand']
  #allocation5 [shape = 'f32[8,64]{1,0:T(8,128)}', space=vmem, size = 0x1000, scoped, tag = 'scratch operand']
  %s0 = inlined_call_operand.hbm [shape: f32[16,32], index: 0, kind: input, shape index: {}]
  %s1 = inlined_call_operand.vmem [shape: f32[32,32], index: 1, kind: input, shape index: {}]
  %s2 = inlined_call_operand.vmem [shape: f32[32,64], index: 2, kind: input, shape index: {}]
  %s3 = inlined_call_operand.vmem [shape: f32[32,64], index: 3, kind: input, shape index: {}]
  %s4 = inlined_call_operand.hbm [shape: f32[32,64], index: 4, kind: input, shape index: {}]
  %s5 = inlined_call_operand.vmem [shape: f32[64,32], index: 5, kind: input, shape index: {}]
  %s6 = inlined_call_operand.hbm [shape: f32[16,32], index: 6, kind: output, shape index: {}]
  %s7 = sld [smem:[#allocation0]]
  $region65: #{tpu_custom_call.1} parent=0
    _
  %s9 = ssub.s32 1, %s7
  %s10 = scalar_select 0, %s9, %s7
  $region1: #{tpu_custom_call.1} parent=0
    #allocation6 [shape = 'u8[8192]{0}', space=vmem, size = 0x2000, scoped, tag = 'input window, operand 0']
    #allocation7 [shape = 's32[2]{0}', space=sflag, size = 0x8, scoped, tag = 'scoped memory for tpu_custom_call.1']
    #allocation8 [shape = 's32[2]{0}', space=sflag, size = 0x8, scoped, tag = 'scoped memory for tpu_custom_call.1']
    #allocation9 [shape = 'u8[16384]{0}', space=vmem, size = 0x4000, scoped, tag = 'input window, operand 4, single buffered']
    #allocation10 [shape = 's32[1]{0}', space=sflag, size = 0x4, scoped, tag = 'scoped memory for tpu_custom_call.1']
    #allocation11 [shape = 'u8[8192]{0}', space=vmem, size = 0x2000, scoped, tag = 'output window, operand 0']
    %11 = vsyncpa [#allocation7], 0
    %s12 = scalar_lea.sflag [#allocation7], 1
    %13 = vsyncpa %s12, 0
    %14 = vsyncpa [#allocation10], 0
    %15 = vsyncpa [#allocation8], 0
    %s16 = scalar_lea.sflag [#allocation8], 1
    %17 = vsyncpa %s16, 0
    loop: start=0, step=1, limit=4
    $region2: #{tpu_custom_call.1} parent=1 // loop_pre_header
      _
    $region3: #{tpu_custom_call.1} parent=1 // loop_header
      %s19 = sphi 0, %s23
      %p20 = scmp.ge.s32.totalorder %s19, 4
      %s29 = sphi 0, %s31
      %s32 = sphi 0, %s29
      %s33 = sphi 0, %s32
      %s49 = sphi 0, %s33
      %s55 = sphi 0, %s57
      %s58 = sphi 0, %s55
      %s59 = sphi 0, %s58
      %s75 = sphi 0, %s59
      %s79 = sphi 0, %s79
      %s81 = sphi 0, %s79
      %s82 = sphi 0, %s81
      %s96 = sphi 0, %s82
      %s100 = sphi 0, %s100
      %s102 = sphi 0, %s100
      %s103 = sphi 0, %s102
      %s117 = sphi 0, %s103
      %s121 = sphi 0, %s121
      %s123 = sphi 0, %s121
      %s124 = sphi 0, %s123
      %s138 = sphi 0, %s124
      %s142 = sphi 0, %s142
      %s144 = sphi 0, %s142
      %s145 = sphi 0, %s144
      %s159 = sphi 0, %s145
      %s165 = sphi 0, %s167
      %s168 = sphi 0, %s165
      %s169 = sphi 0, %s168
      %s185 = sphi 0, %s169
    $region4: #{tpu_custom_call.1} parent=1 // loop_header_branch
      %22 = sbr.rel (%p20) target = $region8
    $region5: #{tpu_custom_call.1} parent=1 // loop_body
      %s24 = ssub.s32 %s19, 1
      %s25 = ssub.s32 %s19, 2
      %s26 = sadd.s32 %s19, 1
      %s27 = ssub.s32 %s19, %s26
      %p28 = scmp.eq.s32.totalorder %s27, 0
      %s30 = sadd.s32 %s29, 1
      %s31 = scalar_select %p28, %s29, %s30
      %p34 = pneg %p28
      %p35 = scmp.eq.s32.totalorder %s19, 1
      %p36 = por %p34, %p35
      %p37 = scmp.ne.s32.totalorder %s29, %s32
      %p38 = scmp.eq.s32.totalorder %s19, 0
      %p39 = por %p37, %p38
      %p40 = scmp.ne.s32.totalorder %s29, %s32
      %p41 = scmp.eq.s32.totalorder %s24, 1
      %p42 = por %p40, %p41
      %p43 = scmp.ne.s32.totalorder %s32, %s33
      %p44 = scmp.eq.s32.totalorder %s24, 0
      %p45 = por %p43, %p44
      %p46 = scmp.ne.s32.totalorder %s32, %s33
      %p47 = scmp.eq.s32.totalorder %s25, 1
      %p48 = por %p46, %p47
      %p50 = scmp.ne.s32.totalorder %s33, %s49
      %p51 = scmp.eq.s32.totalorder %s25, 0
      %p52 = por %p50, %p51
      %s53 = ssub.s32 %s19, %s26
      %p54 = scmp.eq.s32.totalorder %s53, 0
      %s56 = sadd.s32 %s55, 1
      %s57 = scalar_select %p54, %s55, %s56
      %p60 = pneg %p54
      %p61 = scmp.eq.s32.totalorder %s19, 1
      %p62 = por %p60, %p61
      %p63 = scmp.ne.s32.totalorder %s55, %s58
      %p64 = scmp.eq.s32.totalorder %s19, 0
      %p65 = por %p63, %p64
      %p66 = scmp.ne.s32.totalorder %s55, %s58
      %p67 = scmp.eq.s32.totalorder %s24, 1
      %p68 = por %p66, %p67
      %p69 = scmp.ne.s32.totalorder %s58, %s59
      %p70 = scmp.eq.s32.totalorder %s24, 0
      %p71 = por %p69, %p70
      %p72 = scmp.ne.s32.totalorder %s58, %s59
      %p73 = scmp.eq.s32.totalorder %s25, 1
      %p74 = por %p72, %p73
      %p76 = scmp.ne.s32.totalorder %s59, %s75
      %p77 = scmp.eq.s32.totalorder %s25, 0
      %p78 = por %p76, %p77
      %s80 = sadd.s32 %s79, 1
      %p83 = scmp.eq.s32.totalorder %s19, 1
      %p84 = scmp.ne.s32.totalorder %s79, %s81
      %p85 = scmp.eq.s32.totalorder %s19, 0
      %p86 = por %p84, %p85
      %p87 = scmp.ne.s32.totalorder %s79, %s81
      %p88 = scmp.eq.s32.totalorder %s24, 1
      %p89 = por %p87, %p88
      %p90 = scmp.ne.s32.totalorder %s81, %s82
      %p91 = scmp.eq.s32.totalorder %s24, 0
      %p92 = por %p90, %p91
      %p93 = scmp.ne.s32.totalorder %s81, %s82
      %p94 = scmp.eq.s32.totalorder %s25, 1
      %p95 = por %p93, %p94
      %p97 = scmp.ne.s32.totalorder %s82, %s96
      %p98 = scmp.eq.s32.totalorder %s25, 0
      %p99 = por %p97, %p98
      %s101 = sadd.s32 %s100, 1
      %p104 = scmp.eq.s32.totalorder %s19, 1
      %p105 = scmp.ne.s32.totalorder %s100, %s102
      %p106 = scmp.eq.s32.totalorder %s19, 0
      %p107 = por %p105, %p106
      %p108 = scmp.ne.s32.totalorder %s100, %s102
      %p109 = scmp.eq.s32.totalorder %s24, 1
      %p110 = por %p108, %p109
      %p111 = scmp.ne.s32.totalorder %s102, %s103
      %p112 = scmp.eq.s32.totalorder %s24, 0
      %p113 = por %p111, %p112
      %p114 = scmp.ne.s32.totalorder %s102, %s103
      %p115 = scmp.eq.s32.totalorder %s25, 1
      %p116 = por %p114, %p115
      %p118 = scmp.ne.s32.totalorder %s103, %s117
      %p119 = scmp.eq.s32.totalorder %s25, 0
      %p120 = por %p118, %p119
      %s122 = sadd.s32 %s121, 1
      %p125 = scmp.eq.s32.totalorder %s19, 1
      %p126 = scmp.ne.s32.totalorder %s121, %s123
      %p127 = scmp.eq.s32.totalorder %s19, 0
      %p128 = por %p126, %p127
      %p129 = scmp.ne.s32.totalorder %s121, %s123
      %p130 = scmp.eq.s32.totalorder %s24, 1
      %p131 = por %p129, %p130
      %p132 = scmp.ne.s32.totalorder %s123, %s124
      %p133 = scmp.eq.s32.totalorder %s24, 0
      %p134 = por %p132, %p133
      %p135 = scmp.ne.s32.totalorder %s123, %s124
      %p136 = scmp.eq.s32.totalorder %s25, 1
      %p137 = por %p135, %p136
      %p139 = scmp.ne.s32.totalorder %s124, %s138
      %p140 = scmp.eq.s32.totalorder %s25, 0
      %p141 = por %p139, %p140
      %s143 = sadd.s32 %s142, 1
      %p146 = scmp.eq.s32.totalorder %s19, 1
      %p147 = scmp.ne.s32.totalorder %s142, %s144
      %p148 = scmp.eq.s32.totalorder %s19, 0
      %p149 = por %p147, %p148
      %p150 = scmp.ne.s32.totalorder %s142, %s144
      %p151 = scmp.eq.s32.totalorder %s24, 1
      %p152 = por %p150, %p151
      %p153 = scmp.ne.s32.totalorder %s144, %s145
      %p154 = scmp.eq.s32.totalorder %s24, 0
      %p155 = por %p153, %p154
      %p156 = scmp.ne.s32.totalorder %s144, %s145
      %p157 = scmp.eq.s32.totalorder %s25, 1
      %p158 = por %p156, %p157
      %p160 = scmp.ne.s32.totalorder %s145, %s159
      %p161 = scmp.eq.s32.totalorder %s25, 0
      %p162 = por %p160, %p161
      %s163 = ssub.s32 %s19, %s26
      %p164 = scmp.eq.s32.totalorder %s163, 0
      %s166 = sadd.s32 %s165, 1
      %s167 = scalar_select %p164, %s165, %s166
      %p170 = pneg %p164
      %p171 = scmp.eq.s32.totalorder %s19, 1
      %p172 = por %p170, %p171
      %p173 = scmp.ne.s32.totalorder %s165, %s168
      %p174 = scmp.eq.s32.totalorder %s19, 0
      %p175 = por %p173, %p174
      %p176 = scmp.ne.s32.totalorder %s165, %s168
      %p177 = scmp.eq.s32.totalorder %s24, 1
      %p178 = por %p176, %p177
      %p179 = scmp.ne.s32.totalorder %s168, %s169
      %p180 = scmp.eq.s32.totalorder %s24, 0
      %p181 = por %p179, %p180
      %p182 = scmp.ne.s32.totalorder %s168, %s169
      %p183 = scmp.eq.s32.totalorder %s25, 1
      %p184 = por %p182, %p183
      %p186 = scmp.ne.s32.totalorder %s169, %s185
      %p187 = scmp.eq.s32.totalorder %s25, 0
      %p188 = por %p186, %p187
      %p189 = scmp.le.s32.totalorder 1, %s19
      %p190 = scmp.lt.s32.totalorder %s19, 3
      %p191 = pnand %p189, %p190
      %p192 = pneg %p191
      // Predicated region
      $region9: #{tpu_custom_call.1} parent=5 // pred_check
        _
      $region10: #{tpu_custom_call.1} parent=5 // pred_check_branch
        %194 = sbr.rel (%p191) target = $region12
      $region11: #{tpu_custom_call.1} parent=5 // pred_region
        %s195 = ssub.s32 %s19, 1
        // Predicated region
        $region13: #{tpu_custom_call.1} parent=11 // pred_check
          %p196 = pneg %p92
        $region14: #{tpu_custom_call.1} parent=11 // pred_check_branch
          %198 = sbr.rel (%p196) target = $region16
        $region15: #{tpu_custom_call.1} parent=11 // pred_region
          _
        $region16: #{tpu_custom_call.1} parent=11 // pred_fallthru
          _
        // Predicated region
        $region17: #{tpu_custom_call.1} parent=11 // pred_check
          %p199 = pneg %p113
        $region18: #{tpu_custom_call.1} parent=11 // pred_check_branch
          %201 = sbr.rel (%p199) target = $region20
        $region19: #{tpu_custom_call.1} parent=11 // pred_region
          _
        $region20: #{tpu_custom_call.1} parent=11 // pred_fallthru
          _
        // Predicated region
        $region21: #{tpu_custom_call.1} parent=11 // pred_check
          %p202 = pneg %p134
        $region22: #{tpu_custom_call.1} parent=11 // pred_check_branch
          %204 = sbr.rel (%p202) target = $region24
        $region23: #{tpu_custom_call.1} parent=11 // pred_region
          %s206 = ssub.s32 512, 512
          %207 = vsyncadd [#allocation10], %s206
          %s208 = sshll.u32 [#allocation9], 4
          %s209 = int_to_ptr.vmem [resolvable:$true] %s208
          %214 = dma.hbm_to_vmem [thread:$0]  %s4, 512, %s209, [#allocation10], 128, 128, 8
        $region24: #{tpu_custom_call.1} parent=11 // pred_fallthru
          _
        // Predicated region
        $region25: #{tpu_custom_call.1} parent=11 // pred_check
          %p215 = pneg %p155
        $region26: #{tpu_custom_call.1} parent=11 // pred_check_branch
          %217 = sbr.rel (%p215) target = $region28
        $region27: #{tpu_custom_call.1} parent=11 // pred_region
          _
        $region28: #{tpu_custom_call.1} parent=11 // pred_fallthru
          _
      $region12: #{tpu_custom_call.1} parent=5 // pred_fallthru
        _
      %p218 = scmp.lt.s32.totalorder %s19, 2
      // Predicated region
      $region29: #{tpu_custom_call.1} parent=5 // pred_check
        %p219 = pneg %p218
      $region30: #{tpu_custom_call.1} parent=5 // pred_check_branch
        %221 = sbr.rel (%p219) target = $region32
      $region31: #{tpu_custom_call.1} parent=5 // pred_region
        // Predicated region
        $region33: #{tpu_custom_call.1} parent=31 // pred_check
          %p222 = pneg %p39
        $region34: #{tpu_custom_call.1} parent=31 // pred_check_branch
          %224 = sbr.rel (%p222) target = $region36
        $region35: #{tpu_custom_call.1} parent=31 // pred_region
          %s225 = sand.u32 %s29, 1
          %s226 = scalar_lea.sflag [#allocation7], %s225
          %s227 = sand.u32 %s29, 1
          %s228 = smul.addr %s227, 8
          %s229 = scalar_lea.vmem [#allocation6], %s228
          %s231 = ssub.s32 128, 128
          %232 = vsyncadd %s226, %s231
          %s233 = smul.addr %s19, 128
          %s234 = scalar_lea.hbm %s0, %s233
          %s236 = sshll.u32 %s229, 4
          %s237 = int_to_ptr.vmem [resolvable:$true] %s236
          %239 = dma.hbm_to_vmem [thread:$0]  %s234, 128, %s237, %s226
        $region36: #{tpu_custom_call.1} parent=31 // pred_fallthru
          _
        // Predicated region
        $region37: #{tpu_custom_call.1} parent=31 // pred_check
          %p240 = pneg %p65
        $region38: #{tpu_custom_call.1} parent=31 // pred_check_branch
          %242 = sbr.rel (%p240) target = $region40
        $region39: #{tpu_custom_call.1} parent=31 // pred_region
          %s243 = smul.u32 2, %s19
          %p244 = scmp.lt.s32.totalorder %s243, 3
          %s245 = scalar_select %p244, %s243, 3
          %s246 = smul.addr %s245, 8
          %s247 = scalar_lea.vmem %s1, %s246
          %s248 = smul.u32 2, %s19
        $region40: #{tpu_custom_call.1} parent=31 // pred_fallthru
          _
      $region32: #{tpu_custom_call.1} parent=5 // pred_fallthru
        _
      %p249 = scmp.le.s32.totalorder 1, %s19
      %p250 = scmp.lt.s32.totalorder %s19, 3
      %p251 = pnand %p249, %p250
      %p252 = pneg %p251
      // Predicated region
      $region41: #{tpu_custom_call.1} parent=5 // pred_check
        _
      $region42: #{tpu_custom_call.1} parent=5 // pred_check_branch
        %254 = sbr.rel (%p251) target = $region44
      $region43: #{tpu_custom_call.1} parent=5 // pred_region
        %s255 = ssub.s32 %s19, 1
        %s256 = sand.u32 %s32, 1
        %s257 = scalar_lea.sflag [#allocation7], %s256
        %s258 = sand.u32 %s32, 1
        %s259 = smul.addr %s258, 8
        %s260 = scalar_lea.vmem [#allocation6], %s259
        // Predicated region
        $region45: #{tpu_custom_call.1} parent=43 // pred_check
          %p261 = pneg %p45
        $region46: #{tpu_custom_call.1} parent=43 // pred_check_branch
          %263 = sbr.rel (%p261) target = $region48
        $region47: #{tpu_custom_call.1} parent=43 // pred_region
          %264 = dma.done %s257, 128
        $region48: #{tpu_custom_call.1} parent=43 // pred_fallthru
          _
        // Predicated region
        $region49: #{tpu_custom_call.1} parent=43 // pred_check
          %p265 = pneg %p134
        $region50: #{tpu_custom_call.1} parent=43 // pred_check_branch
          %267 = sbr.rel (%p265) target = $region52
        $region51: #{tpu_custom_call.1} parent=43 // pred_region
          %268 = dma.done [#allocation10], 512
        $region52: #{tpu_custom_call.1} parent=43 // pred_fallthru
          _
        %s269 = sand.u32 %s32, 1
        %s270 = scalar_lea.sflag [#allocation7], %s269
        %s271 = sand.u32 %s32, 1
        %s272 = smul.addr %s271, 8
        %s273 = scalar_lea.vmem [#allocation6], %s272
        %p274 = pneg %p45
        %p275 = pneg %p42
        %s276 = smul.u32 2, %s24
        %p277 = scmp.lt.s32.totalorder %s276, 3
        %s278 = scalar_select %p277, %s276, 3
        %s279 = smul.addr %s278, 8
        %s280 = scalar_lea.vmem %s1, %s279
        %p281 = pneg %p71
        %p282 = pneg %p68
        %p283 = pneg %p92
        %p284 = pneg %p89
        %p285 = pneg %p113
        %p286 = pneg %p110
        %p287 = pneg %p134
        %p288 = pneg %p131
        %p289 = pneg %p155
        %p290 = pneg %p152
        %p291 = pneg %p181
        %p292 = pneg %p178
        %s293 = sand.u32 %s168, 1
        %s294 = scalar_lea.sflag [#allocation8], %s293
        %s295 = sand.u32 %s168, 1
        %s296 = smul.addr %s295, 8
        %s297 = scalar_lea.vmem [#allocation11], %s296
        %s298 = smul.u32 2, %s24
        %p299 = scmp.lt.s32.totalorder %s298, 3
        %s300 = scalar_select %p299, %s298, 3
        %s301 = smul.addr %s300, 8
        %s302 = scalar_lea.vmem %s1, %s301
        %s303 = smul.u32 2, %s24
        %v304 = vld [vmem:[%s260] sm:$0xff]
        %v305 = vld [vmem:[%s2] sm:$0xff]
        %v306 = vld [vmem:[%s2 + $0x8] sm:$0xff]
        %v307 = vld [vmem:[%s2 + $0x10] sm:$0xff]
        %v308 = vld [vmem:[%s2 + $0x18] sm:$0xff]
        %vm309 = vcmask 261120
        %v311 = vsel %vm309, %v304, 0
        %313 = vmatprep.subr.mxu0 0.0
        %314 = vmatpush1.msra.mxu0 %v305
        %315 = vmatprep.subr.mxu0 0.0
        %316 = vmatpush1.msra.mxu0 %v306
        %317 = vmatprep.subr.mxu0 0.0
        %318 = vmatpush1.msra.mxu0 %v307
        %319 = vmatprep.subr.mxu0 0.0
        %320 = vmatpush1.msra.mxu0 %v308
        %321 = vmatprep.subr.mxu0 0.0
        %322 = vmatpush1.msra.mxu0 0.0
        %323 = vmatprep.subr.mxu0 0.0
        %324 = vmatpush1.msra.mxu0 0.0
        %325 = vmatprep.subr.mxu0 0.0
        %326 = vmatpush1.msra.mxu0 0.0
        %327 = vmatprep.subr.mxu0 0.0
        %328 = vmatpush1.msra.mxu0 0.0
        %329 = vmatprep.subr.mxu0 0.0
        %330 = vmatpush1.msra.mxu0 0.0
        %331 = vmatprep.subr.mxu0 0.0
        %332 = vmatpush1.msra.mxu0 0.0
        %333 = vmatprep.subr.mxu0 0.0
        %334 = vmatpush1.msra.mxu0 0.0
        %335 = vmatprep.subr.mxu0 0.0
        %336 = vmatpush1.msra.mxu0 0.0
        %337 = vmatprep.subr.mxu0 0.0
        %338 = vmatpush1.msra.mxu0 0.0
        %339 = vmatprep.subr.mxu0 0.0
        %340 = vmatpush1.msra.mxu0 0.0
        %341 = vmatprep.subr.mxu0 0.0
        %342 = vmatpush1.msra.mxu0 0.0
        %343 = vmatprep.subr.mxu0 0.0
        %344 = vmatpush1.msra.mxu0 0.0
        %345 = vmatprep.subr.mxu0 0.0
        %346 = vmatpush1.msra.mxu0 0.0
        %347 = vmatprep.subr.mxu0 0.0
        %348 = vmatpush1.msra.mxu0 0.0
        %349 = vmatprep.subr.mxu0 0.0
        %350 = vmatpush1.msra.mxu0 0.0
        %351 = vmatprep.subr.mxu0 0.0
        %352 = vmatpush1.msra.mxu0 0.0
        %353 = vmatprep.subr.mxu0 0.0
        %354 = vmatpush1.msra.mxu0 0.0
        %355 = vmatprep.subr.mxu0 0.0
        %356 = vmatpush1.msra.mxu0 0.0
        %357 = vmatprep.subr.mxu0 0.0
        %358 = vmatpush1.msra.mxu0 0.0
        %359 = vmatprep.subr.mxu0 0.0
        %360 = vmatpush1.msra.mxu0 0.0
        %361 = vmatprep.subr.mxu0 0.0
        %362 = vmatpush1.msra.mxu0 0.0
        %363 = vmatprep.subr.mxu0 0.0
        %364 = vmatpush1.msra.mxu0 0.0
        %365 = vmatprep.subr.mxu0 0.0
        %366 = vmatpush1.msra.mxu0 0.0
        %367 = vmatprep.subr.mxu0 0.0
        %368 = vmatpush1.msra.mxu0 0.0
        %369 = vmatprep.subr.mxu0 0.0
        %370 = vmatpush1.msra.mxu0 0.0
        %371 = vmatprep.subr.mxu0 0.0
        %372 = vmatpush1.msra.mxu0 0.0
        %373 = vmatprep.subr.mxu0 0.0
        %374 = vmatpush1.msra.mxu0 0.0
        %375 = vmatprep.subr.mxu0 0.0
        %376 = vmatpush1.msra.mxu0 0.0
        %377 = vmatprep.mubr.f32.mxu0 0.0
        %378 = vmatmul.mubr.f32.gmra.mrb[0].mxu0 %v311
        %v379 = vpop.f32.mrb[0].mxu0
        %v380 = vadd.f32 0.0, %v379
        %v381 = vpop.f32.mrb[0].mxu0
        %382 = vdwg.mxu0
        %v383 = vld [vmem:[%s302] sm:$0xff]
        %v384 = vld [vmem:[%s302 + $0x8] sm:$0xff]
        %v385 = vld [vmem:[%s3] sm:$0xff]
        %v386 = vld [vmem:[%s3 + $0x8] sm:$0xff]
        %v387 = vld [vmem:[%s3 + $0x10] sm:$0xff]
        %v388 = vld [vmem:[%s3 + $0x18] sm:$0xff]
        %v390 = vsel %vm309, %v383, 0
        %v393 = vsel %vm309, %v384, 0
        %395 = vmatprep.subr.mxu0 0.0
        %396 = vmatpush1.msra.mxu0 %v385
        %397 = vmatprep.subr.mxu0 0.0
        %398 = vmatpush1.msra.mxu0 %v386
        %399 = vmatprep.subr.mxu0 0.0
        %400 = vmatpush1.msra.mxu0 %v387
        %401 = vmatprep.subr.mxu0 0.0
        %402 = vmatpush1.msra.mxu0 %v388
        %403 = vmatprep.subr.mxu0 0.0
        %404 = vmatpush1.msra.mxu0 0.0
        %405 = vmatprep.subr.mxu0 0.0
        %406 = vmatpush1.msra.mxu0 0.0
        %407 = vmatprep.subr.mxu0 0.0
        %408 = vmatpush1.msra.mxu0 0.0
        %409 = vmatprep.subr.mxu0 0.0
        %410 = vmatpush1.msra.mxu0 0.0
        %411 = vmatprep.subr.mxu0 0.0
        %412 = vmatpush1.msra.mxu0 0.0
        %413 = vmatprep.subr.mxu0 0.0
        %414 = vmatpush1.msra.mxu0 0.0
        %415 = vmatprep.subr.mxu0 0.0
        %416 = vmatpush1.msra.mxu0 0.0
        %417 = vmatprep.subr.mxu0 0.0
        %418 = vmatpush1.msra.mxu0 0.0
        %419 = vmatprep.subr.mxu0 0.0
        %420 = vmatpush1.msra.mxu0 0.0
        %421 = vmatprep.subr.mxu0 0.0
        %422 = vmatpush1.msra.mxu0 0.0
        %423 = vmatprep.subr.mxu0 0.0
        %424 = vmatpush1.msra.mxu0 0.0
        %425 = vmatprep.subr.mxu0 0.0
        %426 = vmatpush1.msra.mxu0 0.0
        %427 = vmatprep.subr.mxu0 0.0
        %428 = vmatpush1.msra.mxu0 0.0
        %429 = vmatprep.subr.mxu0 0.0
        %430 = vmatpush1.msra.mxu0 0.0
        %431 = vmatprep.subr.mxu0 0.0
        %432 = vmatpush1.msra.mxu0 0.0
        %433 = vmatprep.subr.mxu0 0.0
        %434 = vmatpush1.msra.mxu0 0.0
        %435 = vmatprep.subr.mxu0 0.0
        %436 = vmatpush1.msra.mxu0 0.0
        %437 = vmatprep.subr.mxu0 0.0
        %438 = vmatpush1.msra.mxu0 0.0
        %439 = vmatprep.subr.mxu0 0.0
        %440 = vmatpush1.msra.mxu0 0.0
        %441 = vmatprep.subr.mxu0 0.0
        %442 = vmatpush1.msra.mxu0 0.0
        %443 = vmatprep.subr.mxu0 0.0
        %444 = vmatpush1.msra.mxu0 0.0
        %445 = vmatprep.subr.mxu0 0.0
        %446 = vmatpush1.msra.mxu0 0.0
        %447 = vmatprep.subr.mxu0 0.0
        %448 = vmatpush1.msra.mxu0 0.0
        %449 = vmatprep.subr.mxu0 0.0
        %450 = vmatpush1.msra.mxu0 0.0
        %451 = vmatprep.subr.mxu0 0.0
        %452 = vmatpush1.msra.mxu0 0.0
        %453 = vmatprep.subr.mxu0 0.0
        %454 = vmatpush1.msra.mxu0 0.0
        %455 = vmatprep.subr.mxu0 0.0
        %456 = vmatpush1.msra.mxu0 0.0
        %457 = vmatprep.subr.mxu0 0.0
        %458 = vmatpush1.msra.mxu0 0.0
        %459 = vmatprep.mubr.f32.mxu0 0.0
        %460 = vmatmul.mubr.f32.gmra.mrb[0].mxu0 %v390
        %v461 = vpop.f32.mrb[0].mxu0
        %v462 = vadd.f32 0.0, %v461
        %v463 = vpop.f32.mrb[0].mxu0
        %464 = vmatprep.mubr.f32.mxu0 0.0
        %465 = vmatmul.mubr.f32.gmra.mrb[0].mxu0 %v393
        %v466 = vpop.f32.mrb[0].mxu0
        %v467 = vadd.f32 0.0, %v466
        %v468 = vpop.f32.mrb[0].mxu0
        %469 = vdwg.mxu0
        %v470 = vld [vmem:[#allocation9] sm:$0xff]
        %v471 = vld [vmem:[#allocation9 + $0x8] sm:$0xff]
        %v472 = vld [vmem:[#allocation9 + $0x10] sm:$0xff]
        %v473 = vld [vmem:[#allocation9 + $0x18] sm:$0xff]
        %474 = vmatprep.subr.mxu0 0.0
        %475 = vmatpush1.msra.mxu0 %v470
        %476 = vmatprep.subr.mxu0 0.0
        %477 = vmatpush1.msra.mxu0 %v471
        %478 = vmatprep.subr.mxu0 0.0
        %479 = vmatpush1.msra.mxu0 %v472
        %480 = vmatprep.subr.mxu0 0.0
        %481 = vmatpush1.msra.mxu0 %v473
        %482 = vmatprep.subr.mxu0 0.0
        %483 = vmatpush1.msra.mxu0 0.0
        %484 = vmatprep.subr.mxu0 0.0
        %485 = vmatpush1.msra.mxu0 0.0
        %486 = vmatprep.subr.mxu0 0.0
        %487 = vmatpush1.msra.mxu0 0.0
        %488 = vmatprep.subr.mxu0 0.0
        %489 = vmatpush1.msra.mxu0 0.0
        %490 = vmatprep.subr.mxu0 0.0
        %491 = vmatpush1.msra.mxu0 0.0
        %492 = vmatprep.subr.mxu0 0.0
        %493 = vmatpush1.msra.mxu0 0.0
        %494 = vmatprep.subr.mxu0 0.0
        %495 = vmatpush1.msra.mxu0 0.0
        %496 = vmatprep.subr.mxu0 0.0
        %497 = vmatpush1.msra.mxu0 0.0
        %498 = vmatprep.subr.mxu0 0.0
        %499 = vmatpush1.msra.mxu0 0.0
        %500 = vmatprep.subr.mxu0 0.0
        %501 = vmatpush1.msra.mxu0 0.0
        %502 = vmatprep.subr.mxu0 0.0
        %503 = vmatpush1.msra.mxu0 0.0
        %504 = vmatprep.subr.mxu0 0.0
        %505 = vmatpush1.msra.mxu0 0.0
        %506 = vmatprep.subr.mxu0 0.0
        %507 = vmatpush1.msra.mxu0 0.0
        %508 = vmatprep.subr.mxu0 0.0
        %509 = vmatpush1.msra.mxu0 0.0
        %510 = vmatprep.subr.mxu0 0.0
        %511 = vmatpush1.msra.mxu0 0.0
        %512 = vmatprep.subr.mxu0 0.0
        %513 = vmatpush1.msra.mxu0 0.0
        %514 = vmatprep.subr.mxu0 0.0
        %515 = vmatpush1.msra.mxu0 0.0
        %516 = vmatprep.subr.mxu0 0.0
        %517 = vmatpush1.msra.mxu0 0.0
        %518 = vmatprep.subr.mxu0 0.0
        %519 = vmatpush1.msra.mxu0 0.0
        %520 = vmatprep.subr.mxu0 0.0
        %521 = vmatpush1.msra.mxu0 0.0
        %522 = vmatprep.subr.mxu0 0.0
        %523 = vmatpush1.msra.mxu0 0.0
        %524 = vmatprep.subr.mxu0 0.0
        %525 = vmatpush1.msra.mxu0 0.0
        %526 = vmatprep.subr.mxu0 0.0
        %527 = vmatpush1.msra.mxu0 0.0
        %528 = vmatprep.subr.mxu0 0.0
        %529 = vmatpush1.msra.mxu0 0.0
        %530 = vmatprep.subr.mxu0 0.0
        %531 = vmatpush1.msra.mxu0 0.0
        %532 = vmatprep.subr.mxu0 0.0
        %533 = vmatpush1.msra.mxu0 0.0
        %534 = vmatprep.subr.mxu0 0.0
        %535 = vmatpush1.msra.mxu0 0.0
        %536 = vmatprep.subr.mxu0 0.0
        %537 = vmatpush1.msra.mxu0 0.0
        %538 = vmatprep.mubr.f32.mxu0 0.0
        %539 = vmatmul.mubr.f32.gmra.mrb[0].mxu0 %v390
        %v540 = vpop.f32.mrb[0].mxu0
        %v541 = vadd.f32 0.0, %v540
        %v542 = vpop.f32.mrb[0].mxu0
        %543 = vmatprep.mubr.f32.mxu0 0.0
        %544 = vmatmul.mubr.f32.gmra.mrb[0].mxu0 %v393
        %v545 = vpop.f32.mrb[0].mxu0
        %v546 = vadd.f32 0.0, %v545
        %v547 = vpop.f32.mrb[0].mxu0
        %548 = vdwg.mxu0
        %v549 = vmul.f32 %v380, 0.25
        %vm550 = vcmask 523264
        %551 = vst.msk [vmem:[#allocation2] sm:$0xff] %vm550, %v549
        %552 = vst.msk [vmem:[#allocation3] sm:$0xff] %vm550, %v462
        %553 = vst.msk [vmem:[#allocation3 + $0x8] sm:$0xff] %vm550, %v467
        %554 = vst.msk [vmem:[#allocation4] sm:$0xff] %vm550, %v541
        %555 = vst.msk [vmem:[#allocation4 + $0x8] sm:$0xff] %vm550, %v546
        %v556 = vld [vmem:[#allocation2] sm:$0xff]
        %v557 = vld [vmem:[#allocation3] sm:$0xff]
        %v558 = vld [vmem:[#allocation3 + $0x8] sm:$0xff]
        %v559 = vld [vmem:[#allocation4] sm:$0xff]
        %v560 = vld [vmem:[#allocation4 + $0x8] sm:$0xff]
        %vm561 = vcmask 130048
        %v563 = vsel %vm561, %v556, 0
        %v566 = vsel %vm561, %v557, 0
        %v569 = vsel %vm561, %v558, 0
        %571 = vmatprep.subr.mxu0 0.0
        %572 = vmatpush1.xpose.msra.mxu0 %v566
        %573 = vmatprep.subr.mxu0 0.0
        %574 = vmatpush1.xpose.msra.mxu0 %v569
        %575 = vmatprep.subr.mxu0 0.0
        %576 = vmatpush1.xpose.msra.mxu0 0.0
        %577 = vmatprep.subr.mxu0 0.0
        %578 = vmatpush1.xpose.msra.mxu0 0.0
        %579 = vmatprep.subr.mxu0 0.0
        %580 = vmatpush1.xpose.msra.mxu0 0.0
        %581 = vmatprep.subr.mxu0 0.0
        %582 = vmatpush1.xpose.msra.mxu0 0.0
        %583 = vmatprep.subr.mxu0 0.0
        %584 = vmatpush1.xpose.msra.mxu0 0.0
        %585 = vmatprep.subr.mxu0 0.0
        %586 = vmatpush1.xpose.msra.mxu0 0.0
        %587 = vmatprep.subr.mxu0 0.0
        %588 = vmatpush1.xpose.msra.mxu0 0.0
        %589 = vmatprep.subr.mxu0 0.0
        %590 = vmatpush1.xpose.msra.mxu0 0.0
        %591 = vmatprep.subr.mxu0 0.0
        %592 = vmatpush1.xpose.msra.mxu0 0.0
        %593 = vmatprep.subr.mxu0 0.0
        %594 = vmatpush1.xpose.msra.mxu0 0.0
        %595 = vmatprep.subr.mxu0 0.0
        %596 = vmatpush1.xpose.msra.mxu0 0.0
        %597 = vmatprep.subr.mxu0 0.0
        %598 = vmatpush1.xpose.msra.mxu0 0.0
        %599 = vmatprep.subr.mxu0 0.0
        %600 = vmatpush1.xpose.msra.mxu0 0.0
        %601 = vmatprep.subr.mxu0 0.0
        %602 = vmatpush1.xpose.msra.mxu0 0.0
        %603 = vmatprep.subr.mxu0 0.0
        %604 = vmatpush1.xpose.msra.mxu0 0.0
        %605 = vmatprep.subr.mxu0 0.0
        %606 = vmatpush1.xpose.msra.mxu0 0.0
        %607 = vmatprep.subr.mxu0 0.0
        %608 = vmatpush1.xpose.msra.mxu0 0.0
        %609 = vmatprep.subr.mxu0 0.0
        %610 = vmatpush1.xpose.msra.mxu0 0.0
        %611 = vmatprep.subr.mxu0 0.0
        %612 = vmatpush1.xpose.msra.mxu0 0.0
        %613 = vmatprep.subr.mxu0 0.0
        %614 = vmatpush1.xpose.msra.mxu0 0.0
        %615 = vmatprep.subr.mxu0 0.0
        %616 = vmatpush1.xpose.msra.mxu0 0.0
        %617 = vmatprep.subr.mxu0 0.0
        %618 = vmatpush1.xpose.msra.mxu0 0.0
        %619 = vmatprep.subr.mxu0 0.0
        %620 = vmatpush1.xpose.msra.mxu0 0.0
        %621 = vmatprep.subr.mxu0 0.0
        %622 = vmatpush1.xpose.msra.mxu0 0.0
        %623 = vmatprep.subr.mxu0 0.0
        %624 = vmatpush1.xpose.msra.mxu0 0.0
        %625 = vmatprep.subr.mxu0 0.0
        %626 = vmatpush1.xpose.msra.mxu0 0.0
        %627 = vmatprep.subr.mxu0 0.0
        %628 = vmatpush1.xpose.msra.mxu0 0.0
        %629 = vmatprep.subr.mxu0 0.0
        %630 = vmatpush1.xpose.msra.mxu0 0.0
        %631 = vmatprep.subr.mxu0 0.0
        %632 = vmatpush1.xpose.msra.mxu0 0.0
        %633 = vmatprep.subr.mxu0 0.0
        %634 = vmatpush1.xpose.msra.mxu0 0.0
        %635 = vmatprep.mubr.f32.mxu0 0.0
        %636 = vmatmul.mubr.f32.gmra.mrb[0].mxu0 %v563
        %v637 = vpop.f32.mrb[0].mxu0
        %v638 = vadd.f32 0.0, %v637
        %v639 = vpop.f32.mrb[0].mxu0
        %640 = vdwg.mxu0
        %v641 = vsel %vm561, %v638, -inf
        %642 = vmax.xlane.f32.xlu0 %v641
        %v643 = vpop.xlane.xlu0 %642
        %v644 = vsub.f32 %v638, %v643
        %v645 = vmul.f32 %v644, 1.442695
        %v646 = vpow.pop %v645
        %v647 = vsel %vm561, %v646, 0.0
        %648 = vadd.xlane.f32.xlu0 %v647
        %v649 = vpop.xlane.xlu0 %648
        %v650 = vrcp.pop %v649
        %v651 = vmul.f32 %v646, %v650
        %v653 = vsel %vm561, %v651, 0
        %655 = vmatprep.subr.mxu0 0.0
        %656 = vmatpush1.msra.mxu0 %v559
        %657 = vmatprep.subr.mxu0 0.0
        %658 = vmatpush1.msra.mxu0 %v560
        %659 = vmatprep.subr.mxu0 0.0
        %660 = vmatpush1.msra.mxu0 0.0
        %661 = vmatprep.subr.mxu0 0.0
        %662 = vmatpush1.msra.mxu0 0.0
        %663 = vmatprep.subr.mxu0 0.0
        %664 = vmatpush1.msra.mxu0 0.0
        %665 = vmatprep.subr.mxu0 0.0
        %666 = vmatpush1.msra.mxu0 0.0
        %667 = vmatprep.subr.mxu0 0.0
        %668 = vmatpush1.msra.mxu0 0.0
        %669 = vmatprep.subr.mxu0 0.0
        %670 = vmatpush1.msra.mxu0 0.0
        %671 = vmatprep.subr.mxu0 0.0
        %672 = vmatpush1.msra.mxu0 0.0
        %673 = vmatprep.subr.mxu0 0.0
        %674 = vmatpush1.msra.mxu0 0.0
        %675 = vmatprep.subr.mxu0 0.0
        %676 = vmatpush1.msra.mxu0 0.0
        %677 = vmatprep.subr.mxu0 0.0
        %678 = vmatpush1.msra.mxu0 0.0
        %679 = vmatprep.subr.mxu0 0.0
        %680 = vmatpush1.msra.mxu0 0.0
        %681 = vmatprep.subr.mxu0 0.0
        %682 = vmatpush1.msra.mxu0 0.0
        %683 = vmatprep.subr.mxu0 0.0
        %684 = vmatpush1.msra.mxu0 0.0
        %685 = vmatprep.subr.mxu0 0.0
        %686 = vmatpush1.msra.mxu0 0.0
        %687 = vmatprep.subr.mxu0 0.0
        %688 = vmatpush1.msra.mxu0 0.0
        %689 = vmatprep.subr.mxu0 0.0
        %690 = vmatpush1.msra.mxu0 0.0
        %691 = vmatprep.subr.mxu0 0.0
        %692 = vmatpush1.msra.mxu0 0.0
        %693 = vmatprep.subr.mxu0 0.0
        %694 = vmatpush1.msra.mxu0 0.0
        %695 = vmatprep.subr.mxu0 0.0
        %696 = vmatpush1.msra.mxu0 0.0
        %697 = vmatprep.subr.mxu0 0.0
        %698 = vmatpush1.msra.mxu0 0.0
        %699 = vmatprep.subr.mxu0 0.0
        %700 = vmatpush1.msra.mxu0 0.0
        %701 = vmatprep.subr.mxu0 0.0
        %702 = vmatpush1.msra.mxu0 0.0
        %703 = vmatprep.subr.mxu0 0.0
        %704 = vmatpush1.msra.mxu0 0.0
        %705 = vmatprep.subr.mxu0 0.0
        %706 = vmatpush1.msra.mxu0 0.0
        %707 = vmatprep.subr.mxu0 0.0
        %708 = vmatpush1.msra.mxu0 0.0
        %709 = vmatprep.subr.mxu0 0.0
        %710 = vmatpush1.msra.mxu0 0.0
        %711 = vmatprep.subr.mxu0 0.0
        %712 = vmatpush1.msra.mxu0 0.0
        %713 = vmatprep.subr.mxu0 0.0
        %714 = vmatpush1.msra.mxu0 0.0
        %715 = vmatprep.subr.mxu0 0.0
        %716 = vmatpush1.msra.mxu0 0.0
        %717 = vmatprep.subr.mxu0 0.0
        %718 = vmatpush1.msra.mxu0 0.0
        %719 = vmatprep.mubr.f32.mxu0 0.0
        %720 = vmatmul.mubr.f32.gmra.mrb[0].mxu0 %v653
        %v721 = vpop.f32.mrb[0].mxu0
        %v722 = vadd.f32 0.0, %v721
        %v723 = vpop.f32.mrb[0].mxu0
        %724 = vdwg.mxu0
        %725 = vrot.lane.b32.xlu0 %v556, 112
        %v726 = vpop.permute.xlu0 %725
        %727 = vrot.lane.b32.xlu0 %v557, 112
        %v728 = vpop.permute.xlu0 %727
        %729 = vrot.lane.b32.xlu0 %v558, 112
        %v730 = vpop.permute.xlu0 %729
        %v731 = vsel %vm561, %v726, 0
        %v733 = vsel %vm561, %v728, 0
        %v735 = vsel %vm561, %v730, 0
        %737 = vmatprep.subr.mxu0 0.0
        %738 = vmatpush1.xpose.msra.mxu0 %v733
        %739 = vmatprep.subr.mxu0 0.0
        %740 = vmatpush1.xpose.msra.mxu0 %v735
        %741 = vmatprep.subr.mxu0 0.0
        %742 = vmatpush1.xpose.msra.mxu0 0.0
        %743 = vmatprep.subr.mxu0 0.0
        %744 = vmatpush1.xpose.msra.mxu0 0.0
        %745 = vmatprep.subr.mxu0 0.0
        %746 = vmatpush1.xpose.msra.mxu0 0.0
        %747 = vmatprep.subr.mxu0 0.0
        %748 = vmatpush1.xpose.msra.mxu0 0.0
        %749 = vmatprep.subr.mxu0 0.0
        %750 = vmatpush1.xpose.msra.mxu0 0.0
        %751 = vmatprep.subr.mxu0 0.0
        %752 = vmatpush1.xpose.msra.mxu0 0.0
        %753 = vmatprep.subr.mxu0 0.0
        %754 = vmatpush1.xpose.msra.mxu0 0.0
        %755 = vmatprep.subr.mxu0 0.0
        %756 = vmatpush1.xpose.msra.mxu0 0.0
        %757 = vmatprep.subr.mxu0 0.0
        %758 = vmatpush1.xpose.msra.mxu0 0.0
        %759 = vmatprep.subr.mxu0 0.0
        %760 = vmatpush1.xpose.msra.mxu0 0.0
        %761 = vmatprep.subr.mxu0 0.0
        %762 = vmatpush1.xpose.msra.mxu0 0.0
        %763 = vmatprep.subr.mxu0 0.0
        %764 = vmatpush1.xpose.msra.mxu0 0.0
        %765 = vmatprep.subr.mxu0 0.0
        %766 = vmatpush1.xpose.msra.mxu0 0.0
        %767 = vmatprep.subr.mxu0 0.0
        %768 = vmatpush1.xpose.msra.mxu0 0.0
        %769 = vmatprep.subr.mxu0 0.0
        %770 = vmatpush1.xpose.msra.mxu0 0.0
        %771 = vmatprep.subr.mxu0 0.0
        %772 = vmatpush1.xpose.msra.mxu0 0.0
        %773 = vmatprep.subr.mxu0 0.0
        %774 = vmatpush1.xpose.msra.mxu0 0.0
        %775 = vmatprep.subr.mxu0 0.0
        %776 = vmatpush1.xpose.msra.mxu0 0.0
        %777 = vmatprep.subr.mxu0 0.0
        %778 = vmatpush1.xpose.msra.mxu0 0.0
        %779 = vmatprep.subr.mxu0 0.0
        %780 = vmatpush1.xpose.msra.mxu0 0.0
        %781 = vmatprep.subr.mxu0 0.0
        %782 = vmatpush1.xpose.msra.mxu0 0.0
        %783 = vmatprep.subr.mxu0 0.0
        %784 = vmatpush1.xpose.msra.mxu0 0.0
        %785 = vmatprep.subr.mxu0 0.0
        %786 = vmatpush1.xpose.msra.mxu0 0.0
        %787 = vmatprep.subr.mxu0 0.0
        %788 = vmatpush1.xpose.msra.mxu0 0.0
        %789 = vmatprep.subr.mxu0 0.0
        %790 = vmatpush1.xpose.msra.mxu0 0.0
        %791 = vmatprep.subr.mxu0 0.0
        %792 = vmatpush1.xpose.msra.mxu0 0.0
        %793 = vmatprep.subr.mxu0 0.0
        %794 = vmatpush1.xpose.msra.mxu0 0.0
        %795 = vmatprep.subr.mxu0 0.0
        %796 = vmatpush1.xpose.msra.mxu0 0.0
        %797 = vmatprep.subr.mxu0 0.0
        %798 = vmatpush1.xpose.msra.mxu0 0.0
        %799 = vmatprep.subr.mxu0 0.0
        %800 = vmatpush1.xpose.msra.mxu0 0.0
        %801 = vmatprep.mubr.f32.mxu0 0.0
        %802 = vmatmul.mubr.f32.gmra.mrb[0].mxu0 %v731
        %v803 = vpop.f32.mrb[0].mxu0
        %v804 = vadd.f32 0.0, %v803
        %v805 = vpop.f32.mrb[0].mxu0
        %806 = vdwg.mxu0
        %v807 = vsel %vm561, %v804, -inf
        %808 = vmax.xlane.f32.xlu0 %v807
        %v809 = vpop.xlane.xlu0 %808
        %v810 = vsub.f32 %v804, %v809
        %v811 = vmul.f32 %v810, 1.442695
        %v812 = vpow.pop %v811
        %v813 = vsel %vm561, %v812, 0.0
        %814 = vadd.xlane.f32.xlu0 %v813
        %v815 = vpop.xlane.xlu0 %814
        %v816 = vrcp.pop %v815
        %v817 = vmul.f32 %v812, %v816
        %820 = vrot.lane.b32.xlu0 %v559, 112
        %v821 = vpop.permute.xlu0 %820
        %822 = vrot.lane.b32.xlu0 %v560, 112
        %v823 = vpop.permute.xlu0 %822
        %v827 = vsel %vm561, %v817, 0
        %829 = vmatprep.subr.mxu0 0.0
        %830 = vmatpush1.msra.mxu0 %v821
        %831 = vmatprep.subr.mxu0 0.0
        %832 = vmatpush1.msra.mxu0 %v823
        %833 = vmatprep.subr.mxu0 0.0
        %834 = vmatpush1.msra.mxu0 0.0
        %835 = vmatprep.subr.mxu0 0.0
        %836 = vmatpush1.msra.mxu0 0.0
        %837 = vmatprep.subr.mxu0 0.0
        %838 = vmatpush1.msra.mxu0 0.0
        %839 = vmatprep.subr.mxu0 0.0
        %840 = vmatpush1.msra.mxu0 0.0
        %841 = vmatprep.subr.mxu0 0.0
        %842 = vmatpush1.msra.mxu0 0.0
        %843 = vmatprep.subr.mxu0 0.0
        %844 = vmatpush1.msra.mxu0 0.0
        %845 = vmatprep.subr.mxu0 0.0
        %846 = vmatpush1.msra.mxu0 0.0
        %847 = vmatprep.subr.mxu0 0.0
        %848 = vmatpush1.msra.mxu0 0.0
        %849 = vmatprep.subr.mxu0 0.0
        %850 = vmatpush1.msra.mxu0 0.0
        %851 = vmatprep.subr.mxu0 0.0
        %852 = vmatpush1.msra.mxu0 0.0
        %853 = vmatprep.subr.mxu0 0.0
        %854 = vmatpush1.msra.mxu0 0.0
        %855 = vmatprep.subr.mxu0 0.0
        %856 = vmatpush1.msra.mxu0 0.0
        %857 = vmatprep.subr.mxu0 0.0
        %858 = vmatpush1.msra.mxu0 0.0
        %859 = vmatprep.subr.mxu0 0.0
        %860 = vmatpush1.msra.mxu0 0.0
        %861 = vmatprep.subr.mxu0 0.0
        %862 = vmatpush1.msra.mxu0 0.0
        %863 = vmatprep.subr.mxu0 0.0
        %864 = vmatpush1.msra.mxu0 0.0
        %865 = vmatprep.subr.mxu0 0.0
        %866 = vmatpush1.msra.mxu0 0.0
        %867 = vmatprep.subr.mxu0 0.0
        %868 = vmatpush1.msra.mxu0 0.0
        %869 = vmatprep.subr.mxu0 0.0
        %870 = vmatpush1.msra.mxu0 0.0
        %871 = vmatprep.subr.mxu0 0.0
        %872 = vmatpush1.msra.mxu0 0.0
        %873 = vmatprep.subr.mxu0 0.0
        %874 = vmatpush1.msra.mxu0 0.0
        %875 = vmatprep.subr.mxu0 0.0
        %876 = vmatpush1.msra.mxu0 0.0
        %877 = vmatprep.subr.mxu0 0.0
        %878 = vmatpush1.msra.mxu0 0.0
        %879 = vmatprep.subr.mxu0 0.0
        %880 = vmatpush1.msra.mxu0 0.0
        %881 = vmatprep.subr.mxu0 0.0
        %882 = vmatpush1.msra.mxu0 0.0
        %883 = vmatprep.subr.mxu0 0.0
        %884 = vmatpush1.msra.mxu0 0.0
        %885 = vmatprep.subr.mxu0 0.0
        %886 = vmatpush1.msra.mxu0 0.0
        %887 = vmatprep.subr.mxu0 0.0
        %888 = vmatpush1.msra.mxu0 0.0
        %889 = vmatprep.subr.mxu0 0.0
        %890 = vmatpush1.msra.mxu0 0.0
        %891 = vmatprep.subr.mxu0 0.0
        %892 = vmatpush1.msra.mxu0 0.0
        %893 = vmatprep.mubr.f32.mxu0 0.0
        %894 = vmatmul.mubr.f32.gmra.mrb[0].mxu0 %v827
        %v895 = vpop.f32.mrb[0].mxu0
        %v896 = vadd.f32 0.0, %v895
        %v897 = vpop.f32.mrb[0].mxu0
        %898 = vdwg.mxu0
        %899 = vrot.lane.b32.xlu0 %v556, 96
        %v900 = vpop.permute.xlu0 %899
        %901 = vrot.lane.b32.xlu0 %v557, 96
        %v902 = vpop.permute.xlu0 %901
        %903 = vrot.lane.b32.xlu0 %v558, 96
        %v904 = vpop.permute.xlu0 %903
        %v905 = vsel %vm561, %v900, 0
        %v907 = vsel %vm561, %v902, 0
        %v909 = vsel %vm561, %v904, 0
        %911 = vmatprep.subr.mxu0 0.0
        %912 = vmatpush1.xpose.msra.mxu0 %v907
        %913 = vmatprep.subr.mxu0 0.0
        %914 = vmatpush1.xpose.msra.mxu0 %v909
        %915 = vmatprep.subr.mxu0 0.0
        %916 = vmatpush1.xpose.msra.mxu0 0.0
        %917 = vmatprep.subr.mxu0 0.0
        %918 = vmatpush1.xpose.msra.mxu0 0.0
        %919 = vmatprep.subr.mxu0 0.0
        %920 = vmatpush1.xpose.msra.mxu0 0.0
        %921 = vmatprep.subr.mxu0 0.0
        %922 = vmatpush1.xpose.msra.mxu0 0.0
        %923 = vmatprep.subr.mxu0 0.0
        %924 = vmatpush1.xpose.msra.mxu0 0.0
        %925 = vmatprep.subr.mxu0 0.0
        %926 = vmatpush1.xpose.msra.mxu0 0.0
        %927 = vmatprep.subr.mxu0 0.0
        %928 = vmatpush1.xpose.msra.mxu0 0.0
        %929 = vmatprep.subr.mxu0 0.0
        %930 = vmatpush1.xpose.msra.mxu0 0.0
        %931 = vmatprep.subr.mxu0 0.0
        %932 = vmatpush1.xpose.msra.mxu0 0.0
        %933 = vmatprep.subr.mxu0 0.0
        %934 = vmatpush1.xpose.msra.mxu0 0.0
        %935 = vmatprep.subr.mxu0 0.0
        %936 = vmatpush1.xpose.msra.mxu0 0.0
        %937 = vmatprep.subr.mxu0 0.0
        %938 = vmatpush1.xpose.msra.mxu0 0.0
        %939 = vmatprep.subr.mxu0 0.0
        %940 = vmatpush1.xpose.msra.mxu0 0.0
        %941 = vmatprep.subr.mxu0 0.0
        %942 = vmatpush1.xpose.msra.mxu0 0.0
        %943 = vmatprep.subr.mxu0 0.0
        %944 = vmatpush1.xpose.msra.mxu0 0.0
        %945 = vmatprep.subr.mxu0 0.0
        %946 = vmatpush1.xpose.msra.mxu0 0.0
        %947 = vmatprep.subr.mxu0 0.0
        %948 = vmatpush1.xpose.msra.mxu0 0.0
        %949 = vmatprep.subr.mxu0 0.0
        %950 = vmatpush1.xpose.msra.mxu0 0.0
        %951 = vmatprep.subr.mxu0 0.0
        %952 = vmatpush1.xpose.msra.mxu0 0.0
        %953 = vmatprep.subr.mxu0 0.0
        %954 = vmatpush1.xpose.msra.mxu0 0.0
        %955 = vmatprep.subr.mxu0 0.0
        %956 = vmatpush1.xpose.msra.mxu0 0.0
        %957 = vmatprep.subr.mxu0 0.0
        %958 = vmatpush1.xpose.msra.mxu0 0.0
        %959 = vmatprep.subr.mxu0 0.0
        %960 = vmatpush1.xpose.msra.mxu0 0.0
        %961 = vmatprep.subr.mxu0 0.0
        %962 = vmatpush1.xpose.msra.mxu0 0.0
        %963 = vmatprep.subr.mxu0 0.0
        %964 = vmatpush1.xpose.msra.mxu0 0.0
        %965 = vmatprep.subr.mxu0 0.0
        %966 = vmatpush1.xpose.msra.mxu0 0.0
        %967 = vmatprep.subr.mxu0 0.0
        %968 = vmatpush1.xpose.msra.mxu0 0.0
        %969 = vmatprep.subr.mxu0 0.0
        %970 = vmatpush1.xpose.msra.mxu0 0.0
        %971 = vmatprep.subr.mxu0 0.0
        %972 = vmatpush1.xpose.msra.mxu0 0.0
        %973 = vmatprep.subr.mxu0 0.0
        %974 = vmatpush1.xpose.msra.mxu0 0.0
        %975 = vmatprep.mubr.f32.mxu0 0.0
        %976 = vmatmul.mubr.f32.gmra.mrb[0].mxu0 %v905
        %v977 = vpop.f32.mrb[0].mxu0
        %v978 = vadd.f32 0.0, %v977
        %v979 = vpop.f32.mrb[0].mxu0
        %980 = vdwg.mxu0
        %v981 = vsel %vm561, %v978, -inf
        %982 = vmax.xlane.f32.xlu0 %v981
        %v983 = vpop.xlane.xlu0 %982
        %v984 = vsub.f32 %v978, %v983
        %v985 = vmul.f32 %v984, 1.442695
        %v986 = vpow.pop %v985
        %v987 = vsel %vm561, %v986, 0.0
        %988 = vadd.xlane.f32.xlu0 %v987
        %v989 = vpop.xlane.xlu0 %988
        %v990 = vrcp.pop %v989
        %v991 = vmul.f32 %v986, %v990
        %992 = vrot.lane.b32.xlu0 %v559, 96
        %v993 = vpop.permute.xlu0 %992
        %994 = vrot.lane.b32.xlu0 %v560, 96
        %v995 = vpop.permute.xlu0 %994
        %v999 = vsel %vm561, %v991, 0
        %1001 = vmatprep.subr.mxu0 0.0
        %1002 = vmatpush1.msra.mxu0 %v993
        %1003 = vmatprep.subr.mxu0 0.0
        %1004 = vmatpush1.msra.mxu0 %v995
        %1005 = vmatprep.subr.mxu0 0.0
        %1006 = vmatpush1.msra.mxu0 0.0
        %1007 = vmatprep.subr.mxu0 0.0
        %1008 = vmatpush1.msra.mxu0 0.0
        %1009 = vmatprep.subr.mxu0 0.0
        %1010 = vmatpush1.msra.mxu0 0.0
        %1011 = vmatprep.subr.mxu0 0.0
        %1012 = vmatpush1.msra.mxu0 0.0
        %1013 = vmatprep.subr.mxu0 0.0
        %1014 = vmatpush1.msra.mxu0 0.0
        %1015 = vmatprep.subr.mxu0 0.0
        %1016 = vmatpush1.msra.mxu0 0.0
        %1017 = vmatprep.subr.mxu0 0.0
        %1018 = vmatpush1.msra.mxu0 0.0
        %1019 = vmatprep.subr.mxu0 0.0
        %1020 = vmatpush1.msra.mxu0 0.0
        %1021 = vmatprep.subr.mxu0 0.0
        %1022 = vmatpush1.msra.mxu0 0.0
        %1023 = vmatprep.subr.mxu0 0.0
        %1024 = vmatpush1.msra.mxu0 0.0
        %1025 = vmatprep.subr.mxu0 0.0
        %1026 = vmatpush1.msra.mxu0 0.0
        %1027 = vmatprep.subr.mxu0 0.0
        %1028 = vmatpush1.msra.mxu0 0.0
        %1029 = vmatprep.subr.mxu0 0.0
        %1030 = vmatpush1.msra.mxu0 0.0
        %1031 = vmatprep.subr.mxu0 0.0
        %1032 = vmatpush1.msra.mxu0 0.0
        %1033 = vmatprep.subr.mxu0 0.0
        %1034 = vmatpush1.msra.mxu0 0.0
        %1035 = vmatprep.subr.mxu0 0.0
        %1036 = vmatpush1.msra.mxu0 0.0
        %1037 = vmatprep.subr.mxu0 0.0
        %1038 = vmatpush1.msra.mxu0 0.0
        %1039 = vmatprep.subr.mxu0 0.0
        %1040 = vmatpush1.msra.mxu0 0.0
        %1041 = vmatprep.subr.mxu0 0.0
        %1042 = vmatpush1.msra.mxu0 0.0
        %1043 = vmatprep.subr.mxu0 0.0
        %1044 = vmatpush1.msra.mxu0 0.0
        %1045 = vmatprep.subr.mxu0 0.0
        %1046 = vmatpush1.msra.mxu0 0.0
        %1047 = vmatprep.subr.mxu0 0.0
        %1048 = vmatpush1.msra.mxu0 0.0
        %1049 = vmatprep.subr.mxu0 0.0
        %1050 = vmatpush1.msra.mxu0 0.0
        %1051 = vmatprep.subr.mxu0 0.0
        %1052 = vmatpush1.msra.mxu0 0.0
        %1053 = vmatprep.subr.mxu0 0.0
        %1054 = vmatpush1.msra.mxu0 0.0
        %1055 = vmatprep.subr.mxu0 0.0
        %1056 = vmatpush1.msra.mxu0 0.0
        %1057 = vmatprep.subr.mxu0 0.0
        %1058 = vmatpush1.msra.mxu0 0.0
        %1059 = vmatprep.subr.mxu0 0.0
        %1060 = vmatpush1.msra.mxu0 0.0
        %1061 = vmatprep.subr.mxu0 0.0
        %1062 = vmatpush1.msra.mxu0 0.0
        %1063 = vmatprep.subr.mxu0 0.0
        %1064 = vmatpush1.msra.mxu0 0.0
        %1065 = vmatprep.mubr.f32.mxu0 0.0
        %1066 = vmatmul.mubr.f32.gmra.mrb[0].mxu0 %v999
        %v1067 = vpop.f32.mrb[0].mxu0
        %v1068 = vadd.f32 0.0, %v1067
        %v1069 = vpop.f32.mrb[0].mxu0
        %1070 = vdwg.mxu0
        %1071 = vrot.lane.b32.xlu0 %v556, 80
        %v1072 = vpop.permute.xlu0 %1071
        %1073 = vrot.lane.b32.xlu0 %v557, 80
        %v1074 = vpop.permute.xlu0 %1073
        %1075 = vrot.lane.b32.xlu0 %v558, 80
        %v1076 = vpop.permute.xlu0 %1075
        %v1077 = vsel %vm561, %v1072, 0
        %v1079 = vsel %vm561, %v1074, 0
        %v1081 = vsel %vm561, %v1076, 0
        %1083 = vmatprep.subr.mxu0 0.0
        %1084 = vmatpush1.xpose.msra.mxu0 %v1079
        %1085 = vmatprep.subr.mxu0 0.0
        %1086 = vmatpush1.xpose.msra.mxu0 %v1081
        %1087 = vmatprep.subr.mxu0 0.0
        %1088 = vmatpush1.xpose.msra.mxu0 0.0
        %1089 = vmatprep.subr.mxu0 0.0
        %1090 = vmatpush1.xpose.msra.mxu0 0.0
        %1091 = vmatprep.subr.mxu0 0.0
        %1092 = vmatpush1.xpose.msra.mxu0 0.0
        %1093 = vmatprep.subr.mxu0 0.0
        %1094 = vmatpush1.xpose.msra.mxu0 0.0
        %1095 = vmatprep.subr.mxu0 0.0
        %1096 = vmatpush1.xpose.msra.mxu0 0.0
        %1097 = vmatprep.subr.mxu0 0.0
        %1098 = vmatpush1.xpose.msra.mxu0 0.0
        %1099 = vmatprep.subr.mxu0 0.0
        %1100 = vmatpush1.xpose.msra.mxu0 0.0
        %1101 = vmatprep.subr.mxu0 0.0
        %1102 = vmatpush1.xpose.msra.mxu0 0.0
        %1103 = vmatprep.subr.mxu0 0.0
        %1104 = vmatpush1.xpose.msra.mxu0 0.0
        %1105 = vmatprep.subr.mxu0 0.0
        %1106 = vmatpush1.xpose.msra.mxu0 0.0
        %1107 = vmatprep.subr.mxu0 0.0
        %1108 = vmatpush1.xpose.msra.mxu0 0.0
        %1109 = vmatprep.subr.mxu0 0.0
        %1110 = vmatpush1.xpose.msra.mxu0 0.0
        %1111 = vmatprep.subr.mxu0 0.0
        %1112 = vmatpush1.xpose.msra.mxu0 0.0
        %1113 = vmatprep.subr.mxu0 0.0
        %1114 = vmatpush1.xpose.msra.mxu0 0.0
        %1115 = vmatprep.subr.mxu0 0.0
        %1116 = vmatpush1.xpose.msra.mxu0 0.0
        %1117 = vmatprep.subr.mxu0 0.0
        %1118 = vmatpush1.xpose.msra.mxu0 0.0
        %1119 = vmatprep.subr.mxu0 0.0
        %1120 = vmatpush1.xpose.msra.mxu0 0.0
        %1121 = vmatprep.subr.mxu0 0.0
        %1122 = vmatpush1.xpose.msra.mxu0 0.0
        %1123 = vmatprep.subr.mxu0 0.0
        %1124 = vmatpush1.xpose.msra.mxu0 0.0
        %1125 = vmatprep.subr.mxu0 0.0
        %1126 = vmatpush1.xpose.msra.mxu0 0.0
        %1127 = vmatprep.subr.mxu0 0.0
        %1128 = vmatpush1.xpose.msra.mxu0 0.0
        %1129 = vmatprep.subr.mxu0 0.0
        %1130 = vmatpush1.xpose.msra.mxu0 0.0
        %1131 = vmatprep.subr.mxu0 0.0
        %1132 = vmatpush1.xpose.msra.mxu0 0.0
        %1133 = vmatprep.subr.mxu0 0.0
        %1134 = vmatpush1.xpose.msra.mxu0 0.0
        %1135 = vmatprep.subr.mxu0 0.0
        %1136 = vmatpush1.xpose.msra.mxu0 0.0
        %1137 = vmatprep.subr.mxu0 0.0
        %1138 = vmatpush1.xpose.msra.mxu0 0.0
        %1139 = vmatprep.subr.mxu0 0.0
        %1140 = vmatpush1.xpose.msra.mxu0 0.0
        %1141 = vmatprep.subr.mxu0 0.0
        %1142 = vmatpush1.xpose.msra.mxu0 0.0
        %1143 = vmatprep.subr.mxu0 0.0
        %1144 = vmatpush1.xpose.msra.mxu0 0.0
        %1145 = vmatprep.subr.mxu0 0.0
        %1146 = vmatpush1.xpose.msra.mxu0 0.0
        %1147 = vmatprep.mubr.f32.mxu0 0.0
        %1148 = vmatmul.mubr.f32.gmra.mrb[0].mxu0 %v1077
        %v1149 = vpop.f32.mrb[0].mxu0
        %v1150 = vadd.f32 0.0, %v1149
        %v1151 = vpop.f32.mrb[0].mxu0
        %1152 = vdwg.mxu0
        %v1153 = vsel %vm561, %v1150, -inf
        %1154 = vmax.xlane.f32.xlu0 %v1153
        %v1155 = vpop.xlane.xlu0 %1154
        %v1156 = vsub.f32 %v1150, %v1155
        %v1157 = vmul.f32 %v1156, 1.442695
        %v1158 = vpow.pop %v1157
        %v1159 = vsel %vm561, %v1158, 0.0
        %1160 = vadd.xlane.f32.xlu0 %v1159
        %v1161 = vpop.xlane.xlu0 %1160
        %v1162 = vrcp.pop %v1161
        %v1163 = vmul.f32 %v1158, %v1162
        %1164 = vrot.lane.b32.xlu0 %v559, 80
        %v1165 = vpop.permute.xlu0 %1164
        %1166 = vrot.lane.b32.xlu0 %v560, 80
        %v1167 = vpop.permute.xlu0 %1166
        %v1171 = vsel %vm561, %v1163, 0
        %1173 = vmatprep.subr.mxu0 0.0
        %1174 = vmatpush1.msra.mxu0 %v1165
        %1175 = vmatprep.subr.mxu0 0.0
        %1176 = vmatpush1.msra.mxu0 %v1167
        %1177 = vmatprep.subr.mxu0 0.0
        %1178 = vmatpush1.msra.mxu0 0.0
        %1179 = vmatprep.subr.mxu0 0.0
        %1180 = vmatpush1.msra.mxu0 0.0
        %1181 = vmatprep.subr.mxu0 0.0
        %1182 = vmatpush1.msra.mxu0 0.0
        %1183 = vmatprep.subr.mxu0 0.0
        %1184 = vmatpush1.msra.mxu0 0.0
        %1185 = vmatprep.subr.mxu0 0.0
        %1186 = vmatpush1.msra.mxu0 0.0
        %1187 = vmatprep.subr.mxu0 0.0
        %1188 = vmatpush1.msra.mxu0 0.0
        %1189 = vmatprep.subr.mxu0 0.0
        %1190 = vmatpush1.msra.mxu0 0.0
        %1191 = vmatprep.subr.mxu0 0.0
        %1192 = vmatpush1.msra.mxu0 0.0
        %1193 = vmatprep.subr.mxu0 0.0
        %1194 = vmatpush1.msra.mxu0 0.0
        %1195 = vmatprep.subr.mxu0 0.0
        %1196 = vmatpush1.msra.mxu0 0.0
        %1197 = vmatprep.subr.mxu0 0.0
        %1198 = vmatpush1.msra.mxu0 0.0
        %1199 = vmatprep.subr.mxu0 0.0
        %1200 = vmatpush1.msra.mxu0 0.0
        %1201 = vmatprep.subr.mxu0 0.0
        %1202 = vmatpush1.msra.mxu0 0.0
        %1203 = vmatprep.subr.mxu0 0.0
        %1204 = vmatpush1.msra.mxu0 0.0
        %1205 = vmatprep.subr.mxu0 0.0
        %1206 = vmatpush1.msra.mxu0 0.0
        %1207 = vmatprep.subr.mxu0 0.0
        %1208 = vmatpush1.msra.mxu0 0.0
        %1209 = vmatprep.subr.mxu0 0.0
        %1210 = vmatpush1.msra.mxu0 0.0
        %1211 = vmatprep.subr.mxu0 0.0
        %1212 = vmatpush1.msra.mxu0 0.0
        %1213 = vmatprep.subr.mxu0 0.0
        %1214 = vmatpush1.msra.mxu0 0.0
        %1215 = vmatprep.subr.mxu0 0.0
        %1216 = vmatpush1.msra.mxu0 0.0
        %1217 = vmatprep.subr.mxu0 0.0
        %1218 = vmatpush1.msra.mxu0 0.0
        %1219 = vmatprep.subr.mxu0 0.0
        %1220 = vmatpush1.msra.mxu0 0.0
        %1221 = vmatprep.subr.mxu0 0.0
        %1222 = vmatpush1.msra.mxu0 0.0
        %1223 = vmatprep.subr.mxu0 0.0
        %1224 = vmatpush1.msra.mxu0 0.0
        %1225 = vmatprep.subr.mxu0 0.0
        %1226 = vmatpush1.msra.mxu0 0.0
        %1227 = vmatprep.subr.mxu0 0.0
        %1228 = vmatpush1.msra.mxu0 0.0
        %1229 = vmatprep.subr.mxu0 0.0
        %1230 = vmatpush1.msra.mxu0 0.0
        %1231 = vmatprep.subr.mxu0 0.0
        %1232 = vmatpush1.msra.mxu0 0.0
        %1233 = vmatprep.subr.mxu0 0.0
        %1234 = vmatpush1.msra.mxu0 0.0
        %1235 = vmatprep.subr.mxu0 0.0
        %1236 = vmatpush1.msra.mxu0 0.0
        %1237 = vmatprep.mubr.f32.mxu0 0.0
        %1238 = vmatmul.mubr.f32.gmra.mrb[0].mxu0 %v1171
        %v1239 = vpop.f32.mrb[0].mxu0
        %v1240 = vadd.f32 0.0, %v1239
        %v1241 = vpop.f32.mrb[0].mxu0
        %1242 = vdwg.mxu0
        %1244 = vrot.lane.b32.xlu0 %v896, 16
        %v1245 = vpop.permute.xlu0 %1244
        %1248 = vrot.lane.b32.xlu0 %v1068, 32
        %v1249 = vpop.permute.xlu0 %1248
        %1252 = vrot.lane.b32.xlu0 %v1240, 48
        %v1253 = vpop.permute.xlu0 %1252
        %v1255 = vsel %vm561, %v722, %v1245
        %v1256 = vsel %vm309, %v1255, %v1249
        %vm1257 = vcmask 392192
        %v1258 = vsel %vm1257, %v1256, %v1253
        %1259 = vst.msk [vmem:[#allocation5] sm:$0xff] %vm550, %v1258
        %v1260 = vld [vmem:[#allocation5] sm:$0xff]
        %v1261 = vld [vmem:[%s5] sm:$0xff]
        %v1262 = vld [vmem:[%s5 + $0x8] sm:$0xff]
        %v1263 = vld [vmem:[%s5 + $0x10] sm:$0xff]
        %v1264 = vld [vmem:[%s5 + $0x18] sm:$0xff]
        %v1265 = vld [vmem:[%s5 + $0x20] sm:$0xff]
        %v1266 = vld [vmem:[%s5 + $0x28] sm:$0xff]
        %v1267 = vld [vmem:[%s5 + $0x30] sm:$0xff]
        %v1268 = vld [vmem:[%s5 + $0x38] sm:$0xff]
        %v1270 = vsel %vm550, %v1260, 0
        %1272 = vmatprep.subr.mxu0 0.0
        %1273 = vmatpush1.msra.mxu0 %v1261
        %1274 = vmatprep.subr.mxu0 0.0
        %1275 = vmatpush1.msra.mxu0 %v1262
        %1276 = vmatprep.subr.mxu0 0.0
        %1277 = vmatpush1.msra.mxu0 %v1263
        %1278 = vmatprep.subr.mxu0 0.0
        %1279 = vmatpush1.msra.mxu0 %v1264
        %1280 = vmatprep.subr.mxu0 0.0
        %1281 = vmatpush1.msra.mxu0 %v1265
        %1282 = vmatprep.subr.mxu0 0.0
        %1283 = vmatpush1.msra.mxu0 %v1266
        %1284 = vmatprep.subr.mxu0 0.0
        %1285 = vmatpush1.msra.mxu0 %v1267
        %1286 = vmatprep.subr.mxu0 0.0
        %1287 = vmatpush1.msra.mxu0 %v1268
        %1288 = vmatprep.subr.mxu0 0.0
        %1289 = vmatpush1.msra.mxu0 0.0
        %1290 = vmatprep.subr.mxu0 0.0
        %1291 = vmatpush1.msra.mxu0 0.0
        %1292 = vmatprep.subr.mxu0 0.0
        %1293 = vmatpush1.msra.mxu0 0.0
        %1294 = vmatprep.subr.mxu0 0.0
        %1295 = vmatpush1.msra.mxu0 0.0
        %1296 = vmatprep.subr.mxu0 0.0
        %1297 = vmatpush1.msra.mxu0 0.0
        %1298 = vmatprep.subr.mxu0 0.0
        %1299 = vmatpush1.msra.mxu0 0.0
        %1300 = vmatprep.subr.mxu0 0.0
        %1301 = vmatpush1.msra.mxu0 0.0
        %1302 = vmatprep.subr.mxu0 0.0
        %1303 = vmatpush1.msra.mxu0 0.0
        %1304 = vmatprep.subr.mxu0 0.0
        %1305 = vmatpush1.msra.mxu0 0.0
        %1306 = vmatprep.subr.mxu0 0.0
        %1307 = vmatpush1.msra.mxu0 0.0
        %1308 = vmatprep.subr.mxu0 0.0
        %1309 = vmatpush1.msra.mxu0 0.0
        %1310 = vmatprep.subr.mxu0 0.0
        %1311 = vmatpush1.msra.mxu0 0.0
        %1312 = vmatprep.subr.mxu0 0.0
        %1313 = vmatpush1.msra.mxu0 0.0
        %1314 = vmatprep.subr.mxu0 0.0
        %1315 = vmatpush1.msra.mxu0 0.0
        %1316 = vmatprep.subr.mxu0 0.0
        %1317 = vmatpush1.msra.mxu0 0.0
        %1318 = vmatprep.subr.mxu0 0.0
        %1319 = vmatpush1.msra.mxu0 0.0
        %1320 = vmatprep.subr.mxu0 0.0
        %1321 = vmatpush1.msra.mxu0 0.0
        %1322 = vmatprep.subr.mxu0 0.0
        %1323 = vmatpush1.msra.mxu0 0.0
        %1324 = vmatprep.subr.mxu0 0.0
        %1325 = vmatpush1.msra.mxu0 0.0
        %1326 = vmatprep.subr.mxu0 0.0
        %1327 = vmatpush1.msra.mxu0 0.0
        %1328 = vmatprep.subr.mxu0 0.0
        %1329 = vmatpush1.msra.mxu0 0.0
        %1330 = vmatprep.subr.mxu0 0.0
        %1331 = vmatpush1.msra.mxu0 0.0
        %1332 = vmatprep.subr.mxu0 0.0
        %1333 = vmatpush1.msra.mxu0 0.0
        %1334 = vmatprep.subr.mxu0 0.0
        %1335 = vmatpush1.msra.mxu0 0.0
        %1336 = vmatprep.mubr.f32.mxu0 0.0
        %1337 = vmatmul.mubr.f32.gmra.mrb[0].mxu0 %v1270
        %v1338 = vpop.f32.mrb[0].mxu0
        %v1339 = vadd.f32 0.0, %v1338
        %v1340 = vpop.f32.mrb[0].mxu0
        %1341 = vdwg.mxu0
        %1342 = vst.msk [vmem:[%s297] sm:$0xff] %vm309, %v1339
        %s1343 = sand.u32 %s168, 1
        %s1344 = scalar_lea.sflag [#allocation8], %s1343
        %s1345 = sand.u32 %s168, 1
        %s1346 = smul.addr %s1345, 8
        %s1347 = scalar_lea.vmem [#allocation11], %s1346
        // Predicated region
        $region53: #{tpu_custom_call.1} parent=43 // pred_check
          %p1348 = pneg %p178
        $region54: #{tpu_custom_call.1} parent=43 // pred_check_branch
          %1350 = sbr.rel (%p1348) target = $region56
        $region55: #{tpu_custom_call.1} parent=43 // pred_region
          %s1352 = ssub.s32 128, 128
          %1353 = vsyncadd %s1344, %s1352
          %s1354 = smul.addr %s24, 128
          %s1355 = scalar_lea.hbm %s6, %s1354
          %s1357 = sshll.u32 %s1347, 4
          %s1358 = int_to_ptr.vmem [resolvable:$true] %s1357
          %1360 = dma.vmem_to_hbm [thread:$0]  %s1358, 128, %s1355, %s1344
        $region56: #{tpu_custom_call.1} parent=43 // pred_fallthru
          _
      $region44: #{tpu_custom_call.1} parent=5 // pred_fallthru
        _
      %p1361 = scmp.le.s32.totalorder 2, %s19
      // Predicated region
      $region57: #{tpu_custom_call.1} parent=5 // pred_check
        %p1362 = pneg %p1361
      $region58: #{tpu_custom_call.1} parent=5 // pred_check_branch
        %1364 = sbr.rel (%p1362) target = $region60
      $region59: #{tpu_custom_call.1} parent=5 // pred_region
        %s1365 = ssub.s32 %s19, 2
        // Predicated region
        $region61: #{tpu_custom_call.1} parent=59 // pred_check
          %p1366 = pneg %p184
        $region62: #{tpu_custom_call.1} parent=59 // pred_check_branch
          %1368 = sbr.rel (%p1366) target = $region64
        $region63: #{tpu_custom_call.1} parent=59 // pred_region
          %s1369 = sand.u32 %s169, 1
          %s1370 = scalar_lea.sflag [#allocation8], %s1369
          %s1371 = sand.u32 %s169, 1
          %s1372 = smul.addr %s1371, 8
          %s1373 = scalar_lea.vmem [#allocation11], %s1372
          %1374 = dma.done %s1370, 128
        $region64: #{tpu_custom_call.1} parent=59 // pred_fallthru
          _
      $region60: #{tpu_custom_call.1} parent=5 // pred_fallthru
        _
    $region6: #{tpu_custom_call.1} parent=1 // loop_footer
      %s23 = sadd.s32 1, %s19
    $region7: #{tpu_custom_call.1} parent=1 // loop_footer_branch
      %18 = sbr.rel target = $region3
    $region8: #{tpu_custom_call.1} parent=1 // loop_exit
      _
    %1375 = vsyncpa [#allocation7], 1
    %s1376 = scalar_lea.sflag [#allocation7], 1
    %1377 = vsyncpa %s1376, 1
    %1378 = vsyncpa [#allocation10], 1
    %1379 = vsyncpa [#allocation8], 1
    %s1380 = scalar_lea.sflag [#allocation8], 1
    %1381 = vsyncpa %s1380, 1

</llo_original>
